<compile_context>
chip_gen: v6e
topology: v6e:2x2x1
jax: 0.10.0
libtpu: 0.0.40
codegen_flags: <defaults>
</compile_context>

<pallas_src>
import functools

import jax
import jax.numpy as jnp
from jax.experimental import pallas as pl
from jax.experimental.pallas import tpu as pltpu

NEG_INF = -1.0e9          # value used by masked_fill in the reference module
LN_EPS = 1e-5             # PyTorch nn.LayerNorm default eps
MXU_DTYPE = jnp.bfloat16  # MXU-native operand dtype (f32 accumulation kept)


# ----------------------------- in-kernel math -------------------------------

def _layernorm(x, gamma, beta):
    # PyTorch LayerNorm: biased variance over the last dim, f32 math.
    mu = jnp.mean(x, axis=-1, keepdims=True)
    var = jnp.mean(jnp.square(x - mu), axis=-1, keepdims=True)
    return (x - mu) * jax.lax.rsqrt(var + LN_EPS) * gamma + beta


def _mm(a, b):
    """a @ b on the MXU: bf16 operands, f32 accumulation."""
    return jax.lax.dot_general(
        a.astype(MXU_DTYPE), b.astype(MXU_DTYPE),
        dimension_numbers=(((1,), (0,)), ((), ())),
        preferred_element_type=jnp.float32)


def _mm_nt(a, b):
    """a @ b.T without materializing a transpose (contract last dims)."""
    return jax.lax.dot_general(
        a.astype(MXU_DTYPE), b.astype(MXU_DTYPE),
        dimension_numbers=(((1,), (1,)), ((), ())),
        preferred_element_type=jnp.float32)


def _heads_attention(q, k, v, wo, mask_add, num_heads, d_k, d_v):
    """Multi-head attention with accumulated output projection.

    q:  (Sq, H*d_k)  bf16, pre-scaled by 1/sqrt(d_k)
    k:  (Skv, H*d_k) bf16
    v:  (Skv, H*d_v) bf16
    wo: (H*d_v, d_model) bf16 (PyTorch wo transposed row-wise per head)
    mask_add: additive mask (Sq, Skv) in f32 (0 or -1e9), or None
    """
    out = None
    for h in range(num_heads):                      # static unroll, H is small
        qh = q[:, h * d_k:(h + 1) * d_k]
        kh = k[:, h * d_k:(h + 1) * d_k]
        vh = v[:, h * d_v:(h + 1) * d_v]
        s = _mm_nt(qh, kh)                          # (Sq, Skv), f32
        if mask_add is not None:
            s = s + mask_add
        s = s - jnp.max(s, axis=1, keepdims=True)   # softmax over col_dim=1
        e = jnp.exp(s)
        denom = jnp.sum(e, axis=1, keepdims=True)
        p = e * pl.reciprocal(denom, approx=True)   # divide on the EUP slot
        ctx = _mm(p, vh)                            # (Sq, d_v)
        proj = _mm(ctx, wo[h * d_v:(h + 1) * d_v, :])   # (Sq, d_model)
        out = proj if out is None else out + proj
    return out


# ------------------------------ fused kernel --------------------------------

def decoder_stack_kernel(enc_ref, dec_ref, mask_ref, w_ref, vec_ref, fp_ref,
                         out_ref, *, num_heads, d_k, d_v, offsets):
    l = pl.program_id(0)
    n_layers = pl.num_programs(0)
    hk = num_heads * d_k
    hv = num_heads * d_v

    # Seed the VMEM-resident output block (the activation carry) at layer 0.
    @pl.when(l == 0)
    def _():
        out_ref[...] = dec_ref[...]

    dec = out_ref[...]                 # running activation (f32)
    enc = enc_ref[...]                 # bf16, cross-attention K/V source
    mask_add = mask_ref[...]           # f32 additive mask

    # Per-layer LayerNorm / bias vectors, one 8-row slab.
    vecs = vec_ref[...]                # (8, d_model) f32
    g1, b1 = vecs[0:1, :], vecs[1:2, :]
    g2, b2 = vecs[2:3, :], vecs[3:4, :]
    g3, b3 = vecs[4:5, :], vecs[5:6, :]
    bf1, bf2 = vecs[6:7, :], vecs[7:8, :]

    def wseg(name):
        off, rows = offsets[name]      # static Python ints -> free slicing
        return w_ref[pl.ds(off, rows), :]

    # 1) masked multi-head self-attention (one fused QKV matmul, all heads).
    qkv = _mm_nt(dec, wseg("wqkv1"))                # (S_dec, 2*hk + hv), f32
    qkv_b = qkv.astype(MXU_DTYPE)                   # single cast for all heads
    attn1 = _heads_attention(qkv_b[:, :hk], qkv_b[:, hk:2 * hk],
                             qkv_b[:, 2 * hk:2 * hk + hv],
                             wseg("wo1"), mask_add, num_heads, d_k, d_v)
    x = _layernorm(attn1 + dec, g1, b1)
    # TODO(synk): nn.Dropout is stochastic in train mode; eval-mode identity here.

    # 2) cross attention (queries from decoder stream, K/V from encoder).
    q2 = _mm_nt(x, wseg("wq2")).astype(MXU_DTYPE)       # (S_dec, hk)
    kv2 = _mm_nt(enc, wseg("wkv2")).astype(MXU_DTYPE)   # (S_enc, hk + hv)
    attn2 = _heads_attention(q2, kv2[:, :hk], kv2[:, hk:hk + hv],
                             wseg("wo2"), None, num_heads, d_k, d_v)
    y = _layernorm(attn2 + x, g2, b2)

    # 3) position-wise feed-forward + residual + LayerNorm.
    z = _mm_nt(y, wseg("wf1")) + bf1
    z = jnp.maximum(z, 0.0)
    z = _mm_nt(z, wseg("wf2")) + bf2
    z = _layernorm(z + y, g3, b3)

    # One store per step: carry z for the next layer, or write the final
    # LayerNorm of the stack on the last step (only this value hits HBM).
    @pl.when(l < n_layers - 1)
    def _():
        out_ref[...] = z

    @pl.when(l == n_layers - 1)
    def _():
        fp = fp_ref[...]                            # (2, d_model): [gamma; beta]
        out_ref[...] = _layernorm(z, fp[0:1, :], fp[1:2, :])


# --------------------------- host-side packing -------------------------------

def _align8(n):
    return -(-n // 8) * 8


def _weight_layout(num_heads, d_k, d_v, d_model):
    """Row layout of the per-layer weight slab (all matrices share a d_model
    minor dim; row offsets are 8-aligned so in-kernel slices are tile-clean)."""
    hk, hv = num_heads * d_k, num_heads * d_v
    segs = [("wqkv1", 2 * hk + hv), ("wo1", hv), ("wq2", hk),
            ("wkv2", hk + hv), ("wo2", hv), ("wf1", d_model), ("wf2", d_model)]
    offsets, off = {}, 0
    for name, rows in segs:
        offsets[name] = (off, rows)
        off += _align8(rows)
    return offsets, off


def pack_decoder_params(layer_params, final_gamma, final_beta, *,
                        num_heads, d_k, d_v, d_model):
    """Re-layout PyTorch-convention per-layer weights into TWO stacked slabs
    (one bf16 matrix slab, one f32 vector slab) plus the final-norm params."""
    offsets, r_total = _weight_layout(num_heads, d_k, d_v, d_model)
    scale = 1.0 / (d_k ** 0.5)                      # folded into Q rows
    n_layers = len(layer_params)

    def stacked_heads(w):                           # (H, d_out, D) -> (H*d_out, D)
        h, d_out, dm = w.shape
        return w.reshape(h * d_out, dm)

    wslab = jnp.zeros((n_layers, r_total, d_model), jnp.float32)
    vslab = jnp.zeros((n_layers, 8, d_model), jnp.float32)
    for i, p in enumerate(layer_params):
        segs = {
            "wqkv1": jnp.concatenate([stacked_heads(p["wq1"]) * scale,
                                      stacked_heads(p["wk1"]),
                                      stacked_heads(p["wv1"])], axis=0),
            "wo1": p["wo1"].T,                      # (H*d_v, d_model)
            "wq2": stacked_heads(p["wq2"]) * scale,
            "wkv2": jnp.concatenate([stacked_heads(p["wk2"]),
                                     stacked_heads(p["wv2"])], axis=0),
            "wo2": p["wo2"].T,
            "wf1": p["wf1"],                        # PyTorch (out,in); kernel uses a@W.T
            "wf2": p["wf2"],
        }
        for name, w in segs.items():
            off, rows = offsets[name]
            wslab = wslab.at[i, off:off + rows, :].set(w)
        vecs = jnp.concatenate([p["g1"], p["b1"], p["g2"], p["b2"],
                                p["g3"], p["b3"], p["bf1"], p["bf2"]], axis=0)
        vslab = vslab.at[i].set(vecs)

    fparams = jnp.concatenate([final_gamma, final_beta], axis=0)  # (2, d_model)
    return {"wslab": wslab.astype(MXU_DTYPE), "vslab": vslab,
            "fparams": fparams, "offsets": offsets}


# ------------------------------ host wrapper ---------------------------------

def decoder_forward(enc, dec, mask, packed, *, num_heads, d_k, d_v):
    wslab, vslab, fparams = packed["wslab"], packed["vslab"], packed["fparams"]
    n_layers, r_total, _ = wslab.shape
    s_dec, d_model = dec.shape
    s_enc = enc.shape[0]

    # Additive mask precomputed once (replaces compare+select in the kernel);
    # encoder encodings pre-cast to bf16 (only feed the cross-attn KV matmul).
    mask_add = (mask * NEG_INF).astype(jnp.float32)
    enc_b = enc.astype(MXU_DTYPE)

    kernel = functools.partial(decoder_stack_kernel, num_heads=num_heads,
                               d_k=d_k, d_v=d_v, offsets=packed["offsets"])

    in_specs = [
        pl.BlockSpec((s_enc, d_model), lambda l: (0, 0)),            # enc (bf16)
        pl.BlockSpec((s_dec, d_model), lambda l: (0, 0)),            # dec (seed)
        pl.BlockSpec((s_dec, s_dec), lambda l: (0, 0)),              # additive mask
        pl.BlockSpec((None, r_total, d_model), lambda l: (l, 0, 0)),  # weight slab
        pl.BlockSpec((None, 8, d_model), lambda l: (l, 0, 0)),        # LN/bias slab
        pl.BlockSpec((2, d_model), lambda l: (0, 0)),                 # final-norm params
    ]

    return pl.pallas_call(
        kernel,
        grid=(n_layers,),
        in_specs=in_specs,
        # Output block is the activation carry: constant index_map keeps it
        # VMEM-resident across the layer axis; HBM writeback happens once.
        out_specs=pl.BlockSpec((s_dec, d_model), lambda l: (0, 0)),
        out_shape=jax.ShapeDtypeStruct((s_dec, d_model), jnp.float32),
        compiler_params=pltpu.CompilerParams(
            dimension_semantics=("arbitrary",),
            vmem_limit_bytes=32 * 1024 * 1024),
    )(enc_b, dec, mask_add, wslab, vslab, fparams)


# ------------------------- pure-JAX reference (check) ------------------------

def reference_forward(enc, dec, mask, layer_params, fg, fb):
    def ln(x, g, b):
        mu = jnp.mean(x, axis=-1, keepdims=True)
        var = jnp.mean(jnp.square(x - mu), axis=-1, keepdims=True)
        return (x - mu) / jnp.sqrt(var + LN_EPS) * g + b

    def mha(q_in, kv_in, wq, wk, wv, wo, mask_):
        num_heads, d_k, _ = wq.shape
        outs = []
        for h in range(num_heads):
            q = q_in @ wq[h].T
            k = kv_in @ wk[h].T
            v = kv_in @ wv[h].T
            s = (q @ k.T) / jnp.sqrt(jnp.float32(d_k))
            if mask_ is not None:
                s = jnp.where(mask_ > 0, NEG_INF, s)
            outs.append(jax.nn.softmax(s, axis=1) @ v)
        return jnp.concatenate(outs, axis=1) @ wo.T

    for p in layer_params:
        x = mha(dec, dec, p["wq1"], p["wk1"], p["wv1"], p["wo1"], mask)
        x = ln(x + dec, p["g1"], p["b1"])
        y = mha(x, enc, p["wq2"], p["wk2"], p["wv2"], p["wo2"], None)
        y = ln(y + x, p["g2"], p["b2"])
        z = jnp.maximum(y @ p["wf1"].T + p["bf1"], 0.0)
        z = z @ p["wf2"].T + p["bf2"]
        dec = ln(z + y, p["g3"], p["b3"])
    return ln(dec, fg, fb)


# ------------------------------ param init -----------------------------------

def init_params(key, d_k, d_v, d_model, num_heads, n_layers):
    def dense(k, shape, scale=0.1):
        return scale * jax.random.normal(k, shape, jnp.float32)

    layers = []
    for _ in range(n_layers):
        key, *ks = jax.random.split(key, 13)
        layers.append(dict(
            wq1=dense(ks[0], (num_heads, d_k, d_model)),
            wk1=dense(ks[1], (num_heads, d_k, d_model)),
            wv1=dense(ks[2], (num_heads, d_v, d_model)),
            wo1=dense(ks[3], (d_model, num_heads * d_v)),
            g1=jnp.ones((1, d_model), jnp.float32),
            b1=jnp.zeros((1, d_model), jnp.float32),
            wq2=dense(ks[4], (num_heads, d_k, d_model)),
            wk2=dense(ks[5], (num_heads, d_k, d_model)),
            wv2=dense(ks[6], (num_heads, d_v, d_model)),
            wo2=dense(ks[7], (d_model, num_heads * d_v)),
            g2=jnp.ones((1, d_model), jnp.float32),
            b2=jnp.zeros((1, d_model), jnp.float32),
            wf1=dense(ks[8], (d_model, d_model)),
            bf1=dense(ks[9], (1, d_model), scale=0.05),
            wf2=dense(ks[10], (d_model, d_model)),
            bf2=dense(ks[11], (1, d_model), scale=0.05),
            g3=jnp.ones((1, d_model), jnp.float32),
            b3=jnp.zeros((1, d_model), jnp.float32),
        ))
    final_gamma = jnp.ones((1, d_model), jnp.float32)
    final_beta = jnp.zeros((1, d_model), jnp.float32)
    return layers, final_gamma, final_beta


# ---------------------------------- main --------------------------------------

if __name__ == "__main__":
    # Small shapes consistent with the module: 2-D (seq, d_model) encodings.
    d_k, d_v, d_model, num_heads, N = 16, 16, 32, 2, 2
    S_enc, S_dec = 8, 8

    key = jax.random.PRNGKey(0)
    k_enc, k_dec, k_par = jax.random.split(key, 3)
    encoder_encodings = jax.random.normal(k_enc, (S_enc, d_model), jnp.float32)
    decoder_encodings = jax.random.normal(k_dec, (S_dec, d_model), jnp.float32)
    # Causal mask: 1.0 positions are filled with -1e9 before softmax.
    mask = (jnp.triu(jnp.ones((S_dec, S_dec), jnp.float32), k=1) > 0).astype(
        jnp.float32)

    layer_params, fg, fb = init_params(k_par, d_k, d_v, d_model, num_heads, N)
    packed = pack_decoder_params(layer_params, fg, fb, num_heads=num_heads,
                                 d_k=d_k, d_v=d_v, d_model=d_model)

    out = decoder_forward(encoder_encodings, decoder_encodings, mask, packed,
                          num_heads=num_heads, d_k=d_k, d_v=d_v)
    out = jax.block_until_ready(out)

    ref = reference_forward(encoder_encodings, decoder_encodings, mask,
                            layer_params, fg, fb)
    assert out.shape == (S_dec, d_model)
    assert bool(jnp.all(jnp.isfinite(out)))
    # Tolerance accounts for bf16 MXU operands (f32 accumulation) vs f32 ref.
    assert bool(jnp.allclose(out, ref, atol=3e-2, rtol=3e-2)), (
        "Pallas output diverges from pure-JAX reference")

    print("KERNEL_OK")
</pallas_src>

<mosaic_0001>
module attributes {stable_mosaic.version = 11 : i64} {
  func.func @decoder_stack_kernel(%arg0: i32, %arg1: memref<8x32xbf16, #tpu.memory_space<vmem>>, %arg2: memref<8x32xf32, #tpu.memory_space<vmem>>, %arg3: memref<8x8xf32, #tpu.memory_space<vmem>>, %arg4: memref<1x320x32xbf16, #tpu.memory_space<vmem>>, %arg5: memref<1x8x32xf32, #tpu.memory_space<vmem>>, %arg6: memref<2x32xf32, #tpu.memory_space<vmem>>, %arg7: memref<8x32xf32, #tpu.memory_space<vmem>>) attributes {dimension_semantics = [#tpu.dimension_semantics<arbitrary>], iteration_bounds = array<i64: 2>, scalar_prefetch = 0 : i64, scratch_operands = 0 : i64, tpu.core_type = #tpu.core_type<tc>, window_params = [{pipeline_mode = #tpu.pipeline_mode<synchronous>, transform_indices = @transform_0, window_bounds = array<i64: 8, 32>}, {pipeline_mode = #tpu.pipeline_mode<synchronous>, transform_indices = @transform_1, window_bounds = array<i64: 8, 32>}, {pipeline_mode = #tpu.pipeline_mode<synchronous>, transform_indices = @transform_2, window_bounds = array<i64: 8, 8>}, {transform_indices = @transform_3, window_bounds = array<i64: 1, 320, 32>}, {transform_indices = @transform_4, window_bounds = array<i64: 1, 8, 32>}, {pipeline_mode = #tpu.pipeline_mode<synchronous>, transform_indices = @transform_5, window_bounds = array<i64: 2, 32>}, {pipeline_mode = #tpu.pipeline_mode<synchronous>, transform_indices = @transform_6, window_bounds = array<i64: 8, 32>}]} {
    %c0_i32 = arith.constant 0 : i32
    %0 = arith.cmpi eq, %arg0, %c0_i32 : i32
    %1 = arith.extui %0 : i1 to i32
    %c0_i32_0 = arith.constant 0 : i32
    %2 = arith.cmpi ne, %1, %c0_i32_0 : i32
    scf.if %2 {
      %c0_67 = arith.constant 0 : index
      %c0_68 = arith.constant 0 : index
      %208 = vector.load %arg2[%c0_67, %c0_68] : memref<8x32xf32, #tpu.memory_space<vmem>>, vector<8x32xf32>
      %c0_69 = arith.constant 0 : index
      %c0_70 = arith.constant 0 : index
      %209 = vector.load %arg7[%c0_69, %c0_70] : memref<8x32xf32, #tpu.memory_space<vmem>>, vector<8x32xf32>
      tpu.vector_store %arg7[%c0_69, %c0_70], %208 {strides = array<i32>} : memref<8x32xf32, #tpu.memory_space<vmem>>, vector<8x32xf32>,
    } else {
    }
    %c0 = arith.constant 0 : index
    %c0_1 = arith.constant 0 : index
    %3 = vector.load %arg7[%c0, %c0_1] : memref<8x32xf32, #tpu.memory_space<vmem>>, vector<8x32xf32>
    %c0_2 = arith.constant 0 : index
    %c0_3 = arith.constant 0 : index
    %4 = vector.load %arg1[%c0_2, %c0_3] : memref<8x32xbf16, #tpu.memory_space<vmem>>, vector<8x32xbf16>
    %c0_4 = arith.constant 0 : index
    %c0_5 = arith.constant 0 : index
    %5 = vector.load %arg3[%c0_4, %c0_5] : memref<8x8xf32, #tpu.memory_space<vmem>>, vector<8x8xf32>
    %c0_6 = arith.constant 0 : index
    %c0_7 = arith.constant 0 : index
    %c0_8 = arith.constant 0 : index
    %6 = vector.load %arg5[%c0_6, %c0_7, %c0_8] : memref<1x8x32xf32, #tpu.memory_space<vmem>>, vector<1x8x32xf32>
    %7 = vector.shape_cast %6 : vector<1x8x32xf32> to vector<8x32xf32>
    %8 = vector.extract_strided_slice %7 {offsets = [0, 0], sizes = [1, 32], strides = [1, 1]} : vector<8x32xf32> to vector<1x32xf32>
    %9 = vector.extract_strided_slice %7 {offsets = [1, 0], sizes = [1, 32], strides = [1, 1]} : vector<8x32xf32> to vector<1x32xf32>
    %10 = vector.extract_strided_slice %7 {offsets = [2, 0], sizes = [1, 32], strides = [1, 1]} : vector<8x32xf32> to vector<1x32xf32>
    %11 = vector.extract_strided_slice %7 {offsets = [3, 0], sizes = [1, 32], strides = [1, 1]} : vector<8x32xf32> to vector<1x32xf32>
    %12 = vector.extract_strided_slice %7 {offsets = [4, 0], sizes = [1, 32], strides = [1, 1]} : vector<8x32xf32> to vector<1x32xf32>
    %13 = vector.extract_strided_slice %7 {offsets = [5, 0], sizes = [1, 32], strides = [1, 1]} : vector<8x32xf32> to vector<1x32xf32>
    %14 = vector.extract_strided_slice %7 {offsets = [6, 0], sizes = [1, 32], strides = [1, 1]} : vector<8x32xf32> to vector<1x32xf32>
    %15 = vector.extract_strided_slice %7 {offsets = [7, 0], sizes = [1, 32], strides = [1, 1]} : vector<8x32xf32> to vector<1x32xf32>
    %c0_9 = arith.constant 0 : index
    %c0_10 = arith.constant 0 : index
    %c0_11 = arith.constant 0 : index
    %16 = vector.load %arg4[%c0_9, %c0_10, %c0_11] : memref<1x320x32xbf16, #tpu.memory_space<vmem>>, vector<1x96x32xbf16>
    %17 = vector.shape_cast %16 : vector<1x96x32xbf16> to vector<96x32xbf16>
    %18 = arith.truncf %3 : vector<8x32xf32> to vector<8x32xbf16>
    %cst = arith.constant dense<0.000000e+00> : vector<8x96xf32>
    %19 = tpu.matmul %18, %17, %cst {dimension_numbers = #tpu.dot_dimension_numbers<[1], [1], [0], [0], [0, 0, 1, 0], [], []>} : vector<8x32xbf16>, vector<96x32xbf16>, vector<8x96xf32> -> vector<8x96xf32>
    %20 = arith.truncf %19 : vector<8x96xf32> to vector<8x96xbf16>
    %21 = vector.extract_strided_slice %20 {offsets = [0, 0], sizes = [8, 32], strides = [1, 1]} : vector<8x96xbf16> to vector<8x32xbf16>
    %22 = vector.extract_strided_slice %20 {offsets = [0, 32], sizes = [8, 32], strides = [1, 1]} : vector<8x96xbf16> to vector<8x32xbf16>
    %23 = vector.extract_strided_slice %20 {offsets = [0, 64], sizes = [8, 32], strides = [1, 1]} : vector<8x96xbf16> to vector<8x32xbf16>
    %c0_12 = arith.constant 0 : index
    %c96 = arith.constant 96 : index
    %c0_13 = arith.constant 0 : index
    %24 = vector.load %arg4[%c0_12, %c96, %c0_13] : memref<1x320x32xbf16, #tpu.memory_space<vmem>>, vector<1x32x32xbf16>
    %25 = vector.shape_cast %24 : vector<1x32x32xbf16> to vector<32x32xbf16>
    %26 = vector.extract_strided_slice %21 {offsets = [0, 0], sizes = [8, 16], strides = [1, 1]} : vector<8x32xbf16> to vector<8x16xbf16>
    %27 = vector.extract_strided_slice %22 {offsets = [0, 0], sizes = [8, 16], strides = [1, 1]} : vector<8x32xbf16> to vector<8x16xbf16>
    %28 = vector.extract_strided_slice %23 {offsets = [0, 0], sizes = [8, 16], strides = [1, 1]} : vector<8x32xbf16> to vector<8x16xbf16>
    %cst_14 = arith.constant dense<0.000000e+00> : vector<8x8xf32>
    %29 = tpu.matmul %26, %27, %cst_14 {dimension_numbers = #tpu.dot_dimension_numbers<[1], [1], [0], [0], [0, 0, 1, 0], [], []>} : vector<8x16xbf16>, vector<8x16xbf16>, vector<8x8xf32> -> vector<8x8xf32>
    %30 = arith.addf %29, %5 : vector<8x8xf32>
    %cst_15 = arith.constant dense<0xFF800000> : vector<8xf32>
    %31 = vector.multi_reduction <maximumf>, %30, %cst_15 [1] : vector<8x8xf32> to vector<8xf32>
    %32 = vector.shape_cast %31 : vector<8xf32> to vector<8x1xf32>
    %33 = vector.broadcast %32 : vector<8x1xf32> to vector<8x8xf32>
    %34 = arith.subf %30, %33 : vector<8x8xf32>
    %35 = math.exp %34 : vector<8x8xf32>
    %cst_16 = arith.constant dense<0.000000e+00> : vector<8xf32>
    %36 = vector.multi_reduction <add>, %35, %cst_16 [1] : vector<8x8xf32> to vector<8xf32>
    %37 = vector.shape_cast %36 : vector<8xf32> to vector<8x1xf32>
    %38 = tpu.reciprocal %37 {approx = true} : vector<8x1xf32> -> vector<8x1xf32>
    %39 = vector.broadcast %38 : vector<8x1xf32> to vector<8x8xf32>
    %40 = arith.mulf %35, %39 : vector<8x8xf32>
    %41 = arith.truncf %40 : vector<8x8xf32> to vector<8x8xbf16>
    %cst_17 = arith.constant dense<0.000000e+00> : vector<8x16xf32>
    %42 = tpu.matmul %41, %28, %cst_17 {dimension_numbers = #tpu.dot_dimension_numbers<[1], [0], [0], [1], [0, 0, 1, 1], [], []>} : vector<8x8xbf16>, vector<8x16xbf16>, vector<8x16xf32> -> vector<8x16xf32>
    %43 = vector.extract_strided_slice %25 {offsets = [0, 0], sizes = [16, 32], strides = [1, 1]} : vector<32x32xbf16> to vector<16x32xbf16>
    %44 = arith.truncf %42 : vector<8x16xf32> to vector<8x16xbf16>
    %cst_18 = arith.constant dense<0.000000e+00> : vector<8x32xf32>
    %45 = tpu.matmul %44, %43, %cst_18 {dimension_numbers = #tpu.dot_dimension_numbers<[1], [0], [0], [1], [0, 0, 1, 1], [], []>} : vector<8x16xbf16>, vector<16x32xbf16>, vector<8x32xf32> -> vector<8x32xf32>
    %46 = vector.extract_strided_slice %21 {offsets = [0, 16], sizes = [8, 16], strides = [1, 1]} : vector<8x32xbf16> to vector<8x16xbf16>
    %47 = vector.extract_strided_slice %22 {offsets = [0, 16], sizes = [8, 16], strides = [1, 1]} : vector<8x32xbf16> to vector<8x16xbf16>
    %48 = vector.extract_strided_slice %23 {offsets = [0, 16], sizes = [8, 16], strides = [1, 1]} : vector<8x32xbf16> to vector<8x16xbf16>
    %cst_19 = arith.constant dense<0.000000e+00> : vector<8x8xf32>
    %49 = tpu.matmul %46, %47, %cst_19 {dimension_numbers = #tpu.dot_dimension_numbers<[1], [1], [0], [0], [0, 0, 1, 0], [], []>} : vector<8x16xbf16>, vector<8x16xbf16>, vector<8x8xf32> -> vector<8x8xf32>
    %50 = arith.addf %49, %5 : vector<8x8xf32>
    %cst_20 = arith.constant dense<0xFF800000> : vector<8xf32>
    %51 = vector.multi_reduction <maximumf>, %50, %cst_20 [1] : vector<8x8xf32> to vector<8xf32>
    %52 = vector.shape_cast %51 : vector<8xf32> to vector<8x1xf32>
    %53 = vector.broadcast %52 : vector<8x1xf32> to vector<8x8xf32>
    %54 = arith.subf %50, %53 : vector<8x8xf32>
    %55 = math.exp %54 : vector<8x8xf32>
    %cst_21 = arith.constant dense<0.000000e+00> : vector<8xf32>
    %56 = vector.multi_reduction <add>, %55, %cst_21 [1] : vector<8x8xf32> to vector<8xf32>
    %57 = vector.shape_cast %56 : vector<8xf32> to vector<8x1xf32>
    %58 = tpu.reciprocal %57 {approx = true} : vector<8x1xf32> -> vector<8x1xf32>
    %59 = vector.broadcast %58 : vector<8x1xf32> to vector<8x8xf32>
    %60 = arith.mulf %55, %59 : vector<8x8xf32>
    %61 = arith.truncf %60 : vector<8x8xf32> to vector<8x8xbf16>
    %cst_22 = arith.constant dense<0.000000e+00> : vector<8x16xf32>
    %62 = tpu.matmul %61, %48, %cst_22 {dimension_numbers = #tpu.dot_dimension_numbers<[1], [0], [0], [1], [0, 0, 1, 1], [], []>} : vector<8x8xbf16>, vector<8x16xbf16>, vector<8x16xf32> -> vector<8x16xf32>
    %63 = vector.extract_strided_slice %25 {offsets = [16, 0], sizes = [16, 32], strides = [1, 1]} : vector<32x32xbf16> to vector<16x32xbf16>
    %64 = arith.truncf %62 : vector<8x16xf32> to vector<8x16xbf16>
    %cst_23 = arith.constant dense<0.000000e+00> : vector<8x32xf32>
    %65 = tpu.matmul %64, %63, %cst_23 {dimension_numbers = #tpu.dot_dimension_numbers<[1], [0], [0], [1], [0, 0, 1, 1], [], []>} : vector<8x16xbf16>, vector<16x32xbf16>, vector<8x32xf32> -> vector<8x32xf32>
    %66 = arith.addf %45, %65 : vector<8x32xf32>
    %67 = arith.addf %66, %3 : vector<8x32xf32>
    %cst_24 = arith.constant dense<0.000000e+00> : vector<8xf32>
    %68 = vector.multi_reduction <add>, %67, %cst_24 [1] : vector<8x32xf32> to vector<8xf32>
    %69 = vector.shape_cast %68 : vector<8xf32> to vector<8x1xf32>
    %cst_25 = arith.constant 3.200000e+01 : f32
    %70 = vector.broadcast %cst_25 : f32 to vector<8x1xf32>
    %71 = arith.divf %69, %70 : vector<8x1xf32>
    %72 = vector.broadcast %71 : vector<8x1xf32> to vector<8x32xf32>
    %73 = arith.subf %67, %72 : vector<8x32xf32>
    %74 = arith.mulf %73, %73 : vector<8x32xf32>
    %cst_26 = arith.constant dense<0.000000e+00> : vector<8xf32>
    %75 = vector.multi_reduction <add>, %74, %cst_26 [1] : vector<8x32xf32> to vector<8xf32>
    %76 = vector.shape_cast %75 : vector<8xf32> to vector<8x1xf32>
    %cst_27 = arith.constant 3.200000e+01 : f32
    %77 = vector.broadcast %cst_27 : f32 to vector<8x1xf32>
    %78 = arith.divf %76, %77 : vector<8x1xf32>
    %79 = vector.broadcast %71 : vector<8x1xf32> to vector<8x32xf32>
    %80 = arith.subf %67, %79 : vector<8x32xf32>
    %cst_28 = arith.constant 9.99999974E-6 : f32
    %81 = vector.broadcast %cst_28 : f32 to vector<8x1xf32>
    %82 = arith.addf %78, %81 : vector<8x1xf32>
    %83 = math.rsqrt %82 : vector<8x1xf32>
    %84 = vector.broadcast %83 : vector<8x1xf32> to vector<8x32xf32>
    %85 = arith.mulf %80, %84 : vector<8x32xf32>
    %86 = vector.broadcast %8 : vector<1x32xf32> to vector<8x32xf32>
    %87 = arith.mulf %85, %86 : vector<8x32xf32>
    %88 = vector.broadcast %9 : vector<1x32xf32> to vector<8x32xf32>
    %89 = arith.addf %87, %88 : vector<8x32xf32>
    %c0_29 = arith.constant 0 : index
    %c128 = arith.constant 128 : index
    %c0_30 = arith.constant 0 : index
    %90 = vector.load %arg4[%c0_29, %c128, %c0_30] : memref<1x320x32xbf16, #tpu.memory_space<vmem>>, vector<1x32x32xbf16>
    %91 = vector.shape_cast %90 : vector<1x32x32xbf16> to vector<32x32xbf16>
    %92 = arith.truncf %89 : vector<8x32xf32> to vector<8x32xbf16>
    %cst_31 = arith.constant dense<0.000000e+00> : vector<8x32xf32>
    %93 = tpu.matmul %92, %91, %cst_31 {dimension_numbers = #tpu.dot_dimension_numbers<[1], [1], [0], [0], [0, 0, 1, 0], [], []>} : vector<8x32xbf16>, vector<32x32xbf16>, vector<8x32xf32> -> vector<8x32xf32>
    %94 = arith.truncf %93 : vector<8x32xf32> to vector<8x32xbf16>
    %c0_32 = arith.constant 0 : index
    %c160 = arith.constant 160 : index
    %c0_33 = arith.constant 0 : index
    %95 = vector.load %arg4[%c0_32, %c160, %c0_33] : memref<1x320x32xbf16, #tpu.memory_space<vmem>>, vector<1x64x32xbf16>
    %96 = vector.shape_cast %95 : vector<1x64x32xbf16> to vector<64x32xbf16>
    %cst_34 = arith.constant dense<0.000000e+00> : vector<8x64xf32>
    %97 = tpu.matmul %4, %96, %cst_34 {dimension_numbers = #tpu.dot_dimension_numbers<[1], [1], [0], [0], [0, 0, 1, 0], [], []>} : vector<8x32xbf16>, vector<64x32xbf16>, vector<8x64xf32> -> vector<8x64xf32>
    %98 = arith.truncf %97 : vector<8x64xf32> to vector<8x64xbf16>
    %99 = vector.extract_strided_slice %98 {offsets = [0, 0], sizes = [8, 32], strides = [1, 1]} : vector<8x64xbf16> to vector<8x32xbf16>
    %100 = vector.extract_strided_slice %98 {offsets = [0, 32], sizes = [8, 32], strides = [1, 1]} : vector<8x64xbf16> to vector<8x32xbf16>
    %c0_35 = arith.constant 0 : index
    %c224 = arith.constant 224 : index
    %c0_36 = arith.constant 0 : index
    %101 = vector.load %arg4[%c0_35, %c224, %c0_36] : memref<1x320x32xbf16, #tpu.memory_space<vmem>>, vector<1x32x32xbf16>
    %102 = vector.shape_cast %101 : vector<1x32x32xbf16> to vector<32x32xbf16>
    %103 = vector.extract_strided_slice %94 {offsets = [0, 0], sizes = [8, 16], strides = [1, 1]} : vector<8x32xbf16> to vector<8x16xbf16>
    %104 = vector.extract_strided_slice %99 {offsets = [0, 0], sizes = [8, 16], strides = [1, 1]} : vector<8x32xbf16> to vector<8x16xbf16>
    %105 = vector.extract_strided_slice %100 {offsets = [0, 0], sizes = [8, 16], strides = [1, 1]} : vector<8x32xbf16> to vector<8x16xbf16>
    %cst_37 = arith.constant dense<0.000000e+00> : vector<8x8xf32>
    %106 = tpu.matmul %103, %104, %cst_37 {dimension_numbers = #tpu.dot_dimension_numbers<[1], [1], [0], [0], [0, 0, 1, 0], [], []>} : vector<8x16xbf16>, vector<8x16xbf16>, vector<8x8xf32> -> vector<8x8xf32>
    %cst_38 = arith.constant dense<0xFF800000> : vector<8xf32>
    %107 = vector.multi_reduction <maximumf>, %106, %cst_38 [1] : vector<8x8xf32> to vector<8xf32>
    %108 = vector.shape_cast %107 : vector<8xf32> to vector<8x1xf32>
    %109 = vector.broadcast %108 : vector<8x1xf32> to vector<8x8xf32>
    %110 = arith.subf %106, %109 : vector<8x8xf32>
    %111 = math.exp %110 : vector<8x8xf32>
    %cst_39 = arith.constant dense<0.000000e+00> : vector<8xf32>
    %112 = vector.multi_reduction <add>, %111, %cst_39 [1] : vector<8x8xf32> to vector<8xf32>
    %113 = vector.shape_cast %112 : vector<8xf32> to vector<8x1xf32>
    %114 = tpu.reciprocal %113 {approx = true} : vector<8x1xf32> -> vector<8x1xf32>
    %115 = vector.broadcast %114 : vector<8x1xf32> to vector<8x8xf32>
    %116 = arith.mulf %111, %115 : vector<8x8xf32>
    %117 = arith.truncf %116 : vector<8x8xf32> to vector<8x8xbf16>
    %cst_40 = arith.constant dense<0.000000e+00> : vector<8x16xf32>
    %118 = tpu.matmul %117, %105, %cst_40 {dimension_numbers = #tpu.dot_dimension_numbers<[1], [0], [0], [1], [0, 0, 1, 1], [], []>} : vector<8x8xbf16>, vector<8x16xbf16>, vector<8x16xf32> -> vector<8x16xf32>
    %119 = vector.extract_strided_slice %102 {offsets = [0, 0], sizes = [16, 32], strides = [1, 1]} : vector<32x32xbf16> to vector<16x32xbf16>
    %120 = arith.truncf %118 : vector<8x16xf32> to vector<8x16xbf16>
    %cst_41 = arith.constant dense<0.000000e+00> : vector<8x32xf32>
    %121 = tpu.matmul %120, %119, %cst_41 {dimension_numbers = #tpu.dot_dimension_numbers<[1], [0], [0], [1], [0, 0, 1, 1], [], []>} : vector<8x16xbf16>, vector<16x32xbf16>, vector<8x32xf32> -> vector<8x32xf32>
    %122 = vector.extract_strided_slice %94 {offsets = [0, 16], sizes = [8, 16], strides = [1, 1]} : vector<8x32xbf16> to vector<8x16xbf16>
    %123 = vector.extract_strided_slice %99 {offsets = [0, 16], sizes = [8, 16], strides = [1, 1]} : vector<8x32xbf16> to vector<8x16xbf16>
    %124 = vector.extract_strided_slice %100 {offsets = [0, 16], sizes = [8, 16], strides = [1, 1]} : vector<8x32xbf16> to vector<8x16xbf16>
    %cst_42 = arith.constant dense<0.000000e+00> : vector<8x8xf32>
    %125 = tpu.matmul %122, %123, %cst_42 {dimension_numbers = #tpu.dot_dimension_numbers<[1], [1], [0], [0], [0, 0, 1, 0], [], []>} : vector<8x16xbf16>, vector<8x16xbf16>, vector<8x8xf32> -> vector<8x8xf32>
    %cst_43 = arith.constant dense<0xFF800000> : vector<8xf32>
    %126 = vector.multi_reduction <maximumf>, %125, %cst_43 [1] : vector<8x8xf32> to vector<8xf32>
    %127 = vector.shape_cast %126 : vector<8xf32> to vector<8x1xf32>
    %128 = vector.broadcast %127 : vector<8x1xf32> to vector<8x8xf32>
    %129 = arith.subf %125, %128 : vector<8x8xf32>
    %130 = math.exp %129 : vector<8x8xf32>
    %cst_44 = arith.constant dense<0.000000e+00> : vector<8xf32>
    %131 = vector.multi_reduction <add>, %130, %cst_44 [1] : vector<8x8xf32> to vector<8xf32>
    %132 = vector.shape_cast %131 : vector<8xf32> to vector<8x1xf32>
    %133 = tpu.reciprocal %132 {approx = true} : vector<8x1xf32> -> vector<8x1xf32>
    %134 = vector.broadcast %133 : vector<8x1xf32> to vector<8x8xf32>
    %135 = arith.mulf %130, %134 : vector<8x8xf32>
    %136 = arith.truncf %135 : vector<8x8xf32> to vector<8x8xbf16>
    %cst_45 = arith.constant dense<0.000000e+00> : vector<8x16xf32>
    %137 = tpu.matmul %136, %124, %cst_45 {dimension_numbers = #tpu.dot_dimension_numbers<[1], [0], [0], [1], [0, 0, 1, 1], [], []>} : vector<8x8xbf16>, vector<8x16xbf16>, vector<8x16xf32> -> vector<8x16xf32>
    %138 = vector.extract_strided_slice %102 {offsets = [16, 0], sizes = [16, 32], strides = [1, 1]} : vector<32x32xbf16> to vector<16x32xbf16>
    %139 = arith.truncf %137 : vector<8x16xf32> to vector<8x16xbf16>
    %cst_46 = arith.constant dense<0.000000e+00> : vector<8x32xf32>
    %140 = tpu.matmul %139, %138, %cst_46 {dimension_numbers = #tpu.dot_dimension_numbers<[1], [0], [0], [1], [0, 0, 1, 1], [], []>} : vector<8x16xbf16>, vector<16x32xbf16>, vector<8x32xf32> -> vector<8x32xf32>
    %141 = arith.addf %121, %140 : vector<8x32xf32>
    %142 = arith.addf %141, %89 : vector<8x32xf32>
    %cst_47 = arith.constant dense<0.000000e+00> : vector<8xf32>
    %143 = vector.multi_reduction <add>, %142, %cst_47 [1] : vector<8x32xf32> to vector<8xf32>
    %144 = vector.shape_cast %143 : vector<8xf32> to vector<8x1xf32>
    %cst_48 = arith.constant 3.200000e+01 : f32
    %145 = vector.broadcast %cst_48 : f32 to vector<8x1xf32>
    %146 = arith.divf %144, %145 : vector<8x1xf32>
    %147 = vector.broadcast %146 : vector<8x1xf32> to vector<8x32xf32>
    %148 = arith.subf %142, %147 : vector<8x32xf32>
    %149 = arith.mulf %148, %148 : vector<8x32xf32>
    %cst_49 = arith.constant dense<0.000000e+00> : vector<8xf32>
    %150 = vector.multi_reduction <add>, %149, %cst_49 [1] : vector<8x32xf32> to vector<8xf32>
    %151 = vector.shape_cast %150 : vector<8xf32> to vector<8x1xf32>
    %cst_50 = arith.constant 3.200000e+01 : f32
    %152 = vector.broadcast %cst_50 : f32 to vector<8x1xf32>
    %153 = arith.divf %151, %152 : vector<8x1xf32>
    %154 = vector.broadcast %146 : vector<8x1xf32> to vector<8x32xf32>
    %155 = arith.subf %142, %154 : vector<8x32xf32>
    %cst_51 = arith.constant 9.99999974E-6 : f32
    %156 = vector.broadcast %cst_51 : f32 to vector<8x1xf32>
    %157 = arith.addf %153, %156 : vector<8x1xf32>
    %158 = math.rsqrt %157 : vector<8x1xf32>
    %159 = vector.broadcast %158 : vector<8x1xf32> to vector<8x32xf32>
    %160 = arith.mulf %155, %159 : vector<8x32xf32>
    %161 = vector.broadcast %10 : vector<1x32xf32> to vector<8x32xf32>
    %162 = arith.mulf %160, %161 : vector<8x32xf32>
    %163 = vector.broadcast %11 : vector<1x32xf32> to vector<8x32xf32>
    %164 = arith.addf %162, %163 : vector<8x32xf32>
    %c0_52 = arith.constant 0 : index
    %c256 = arith.constant 256 : index
    %c0_53 = arith.constant 0 : index
    %165 = vector.load %arg4[%c0_52, %c256, %c0_53] : memref<1x320x32xbf16, #tpu.memory_space<vmem>>, vector<1x32x32xbf16>
    %166 = vector.shape_cast %165 : vector<1x32x32xbf16> to vector<32x32xbf16>
    %167 = arith.truncf %164 : vector<8x32xf32> to vector<8x32xbf16>
    %cst_54 = arith.constant dense<0.000000e+00> : vector<8x32xf32>
    %168 = tpu.matmul %167, %166, %cst_54 {dimension_numbers = #tpu.dot_dimension_numbers<[1], [1], [0], [0], [0, 0, 1, 0], [], []>} : vector<8x32xbf16>, vector<32x32xbf16>, vector<8x32xf32> -> vector<8x32xf32>
    %169 = vector.broadcast %14 : vector<1x32xf32> to vector<8x32xf32>
    %170 = arith.addf %168, %169 : vector<8x32xf32>
    %cst_55 = arith.constant 0.000000e+00 : f32
    %171 = vector.broadcast %cst_55 : f32 to vector<8x32xf32>
    %172 = arith.maximumf %170, %171 : vector<8x32xf32>
    %c0_56 = arith.constant 0 : index
    %c288 = arith.constant 288 : index
    %c0_57 = arith.constant 0 : index
    %173 = vector.load %arg4[%c0_56, %c288, %c0_57] : memref<1x320x32xbf16, #tpu.memory_space<vmem>>, vector<1x32x32xbf16>
    %174 = vector.shape_cast %173 : vector<1x32x32xbf16> to vector<32x32xbf16>
    %175 = arith.truncf %172 : vector<8x32xf32> to vector<8x32xbf16>
    %cst_58 = arith.constant dense<0.000000e+00> : vector<8x32xf32>
    %176 = tpu.matmul %175, %174, %cst_58 {dimension_numbers = #tpu.dot_dimension_numbers<[1], [1], [0], [0], [0, 0, 1, 0], [], []>} : vector<8x32xbf16>, vector<32x32xbf16>, vector<8x32xf32> -> vector<8x32xf32>
    %177 = vector.broadcast %15 : vector<1x32xf32> to vector<8x32xf32>
    %178 = arith.addf %176, %177 : vector<8x32xf32>
    %179 = arith.addf %178, %164 : vector<8x32xf32>
    %cst_59 = arith.constant dense<0.000000e+00> : vector<8xf32>
    %180 = vector.multi_reduction <add>, %179, %cst_59 [1] : vector<8x32xf32> to vector<8xf32>
    %181 = vector.shape_cast %180 : vector<8xf32> to vector<8x1xf32>
    %cst_60 = arith.constant 3.200000e+01 : f32
    %182 = vector.broadcast %cst_60 : f32 to vector<8x1xf32>
    %183 = arith.divf %181, %182 : vector<8x1xf32>
    %184 = vector.broadcast %183 : vector<8x1xf32> to vector<8x32xf32>
    %185 = arith.subf %179, %184 : vector<8x32xf32>
    %186 = arith.mulf %185, %185 : vector<8x32xf32>
    %cst_61 = arith.constant dense<0.000000e+00> : vector<8xf32>
    %187 = vector.multi_reduction <add>, %186, %cst_61 [1] : vector<8x32xf32> to vector<8xf32>
    %188 = vector.shape_cast %187 : vector<8xf32> to vector<8x1xf32>
    %cst_62 = arith.constant 3.200000e+01 : f32
    %189 = vector.broadcast %cst_62 : f32 to vector<8x1xf32>
    %190 = arith.divf %188, %189 : vector<8x1xf32>
    %191 = vector.broadcast %183 : vector<8x1xf32> to vector<8x32xf32>
    %192 = arith.subf %179, %191 : vector<8x32xf32>
    %cst_63 = arith.constant 9.99999974E-6 : f32
    %193 = vector.broadcast %cst_63 : f32 to vector<8x1xf32>
    %194 = arith.addf %190, %193 : vector<8x1xf32>
    %195 = math.rsqrt %194 : vector<8x1xf32>
    %196 = vector.broadcast %195 : vector<8x1xf32> to vector<8x32xf32>
    %197 = arith.mulf %192, %196 : vector<8x32xf32>
    %198 = vector.broadcast %12 : vector<1x32xf32> to vector<8x32xf32>
    %199 = arith.mulf %197, %198 : vector<8x32xf32>
    %200 = vector.broadcast %13 : vector<1x32xf32> to vector<8x32xf32>
    %201 = arith.addf %199, %200 : vector<8x32xf32>
    %c1_i32 = arith.constant 1 : i32
    %202 = arith.cmpi slt, %arg0, %c1_i32 : i32
    %203 = arith.extui %202 : i1 to i32
    %c0_i32_64 = arith.constant 0 : i32
    %204 = arith.cmpi ne, %203, %c0_i32_64 : i32
    scf.if %204 {
      %c0_67 = arith.constant 0 : index
      %c0_68 = arith.constant 0 : index
      %208 = vector.load %arg7[%c0_67, %c0_68] : memref<8x32xf32, #tpu.memory_space<vmem>>, vector<8x32xf32>
      tpu.vector_store %arg7[%c0_67, %c0_68], %201 {strides = array<i32>} : memref<8x32xf32, #tpu.memory_space<vmem>>, vector<8x32xf32>,
    } else {
    }
    %c1_i32_65 = arith.constant 1 : i32
    %205 = arith.cmpi eq, %arg0, %c1_i32_65 : i32
    %206 = arith.extui %205 : i1 to i32
    %c0_i32_66 = arith.constant 0 : i32
    %207 = arith.cmpi ne, %206, %c0_i32_66 : i32
    scf.if %207 {
      %c0_67 = arith.constant 0 : index
      %c0_68 = arith.constant 0 : index
      %208 = vector.load %arg6[%c0_67, %c0_68] : memref<2x32xf32, #tpu.memory_space<vmem>>, vector<2x32xf32>
      %209 = vector.extract_strided_slice %208 {offsets = [0, 0], sizes = [1, 32], strides = [1, 1]} : vector<2x32xf32> to vector<1x32xf32>
      %210 = vector.extract_strided_slice %208 {offsets = [1, 0], sizes = [1, 32], strides = [1, 1]} : vector<2x32xf32> to vector<1x32xf32>
      %cst_69 = arith.constant dense<0.000000e+00> : vector<8xf32>
      %211 = vector.multi_reduction <add>, %201, %cst_69 [1] : vector<8x32xf32> to vector<8xf32>
      %212 = vector.shape_cast %211 : vector<8xf32> to vector<8x1xf32>
      %cst_70 = arith.constant 3.200000e+01 : f32
      %213 = vector.broadcast %cst_70 : f32 to vector<8x1xf32>
      %214 = arith.divf %212, %213 : vector<8x1xf32>
      %215 = vector.broadcast %214 : vector<8x1xf32> to vector<8x32xf32>
      %216 = arith.subf %201, %215 : vector<8x32xf32>
      %217 = arith.mulf %216, %216 : vector<8x32xf32>
      %cst_71 = arith.constant dense<0.000000e+00> : vector<8xf32>
      %218 = vector.multi_reduction <add>, %217, %cst_71 [1] : vector<8x32xf32> to vector<8xf32>
      %219 = vector.shape_cast %218 : vector<8xf32> to vector<8x1xf32>
      %cst_72 = arith.constant 3.200000e+01 : f32
      %220 = vector.broadcast %cst_72 : f32 to vector<8x1xf32>
      %221 = arith.divf %219, %220 : vector<8x1xf32>
      %222 = vector.broadcast %214 : vector<8x1xf32> to vector<8x32xf32>
      %223 = arith.subf %201, %222 : vector<8x32xf32>
      %cst_73 = arith.constant 9.99999974E-6 : f32
      %224 = vector.broadcast %cst_73 : f32 to vector<8x1xf32>
      %225 = arith.addf %221, %224 : vector<8x1xf32>
      %226 = math.rsqrt %225 : vector<8x1xf32>
      %227 = vector.broadcast %226 : vector<8x1xf32> to vector<8x32xf32>
      %228 = arith.mulf %223, %227 : vector<8x32xf32>
      %229 = vector.broadcast %209 : vector<1x32xf32> to vector<8x32xf32>
      %230 = arith.mulf %228, %229 : vector<8x32xf32>
      %231 = vector.broadcast %210 : vector<1x32xf32> to vector<8x32xf32>
      %232 = arith.addf %230, %231 : vector<8x32xf32>
      %c0_74 = arith.constant 0 : index
      %c0_75 = arith.constant 0 : index
      %233 = vector.load %arg7[%c0_74, %c0_75] : memref<8x32xf32, #tpu.memory_space<vmem>>, vector<8x32xf32>
      tpu.vector_store %arg7[%c0_74, %c0_75], %232 {strides = array<i32>} : memref<8x32xf32, #tpu.memory_space<vmem>>, vector<8x32xf32>,
    } else {
    }
    return
  }
  func.func @transform_0(%arg0: i32) -> (i32, i32) {
    %c0_i32 = arith.constant 0 : i32
    %c0_i32_0 = arith.constant 0 : i32
    %c0_i32_1 = arith.constant 0 : i32
    return %c0_i32, %c0_i32_0 : i32, i32
  }
  func.func @transform_1(%arg0: i32) -> (i32, i32) {
    %c0_i32 = arith.constant 0 : i32
    %c0_i32_0 = arith.constant 0 : i32
    %c0_i32_1 = arith.constant 0 : i32
    return %c0_i32, %c0_i32_0 : i32, i32
  }
  func.func @transform_2(%arg0: i32) -> (i32, i32) {
    %c0_i32 = arith.constant 0 : i32
    %c0_i32_0 = arith.constant 0 : i32
    %c0_i32_1 = arith.constant 0 : i32
    return %c0_i32, %c0_i32_0 : i32, i32
  }
  func.func @transform_3(%arg0: i32) -> (i32, i32, i32) {
    %c0_i32 = arith.constant 0 : i32
    %c0_i32_0 = arith.constant 0 : i32
    %c0_i32_1 = arith.constant 0 : i32
    return %arg0, %c0_i32, %c0_i32_0 : i32, i32, i32
  }
  func.func @transform_4(%arg0: i32) -> (i32, i32, i32) {
    %c0_i32 = arith.constant 0 : i32
    %c0_i32_0 = arith.constant 0 : i32
    %c0_i32_1 = arith.constant 0 : i32
    return %arg0, %c0_i32, %c0_i32_0 : i32, i32, i32
  }
  func.func @transform_5(%arg0: i32) -> (i32, i32) {
    %c0_i32 = arith.constant 0 : i32
    %c0_i32_0 = arith.constant 0 : i32
    %c0_i32_1 = arith.constant 0 : i32
    return %c0_i32, %c0_i32_0 : i32, i32
  }
  func.func @transform_6(%arg0: i32) -> (i32, i32) {
    %c0_i32 = arith.constant 0 : i32
    %c0_i32_0 = arith.constant 0 : i32
    %c0_i32_1 = arith.constant 0 : i32
    return %c0_i32, %c0_i32_0 : i32, i32
  }
}

</mosaic_0001>

<llo_original>
// kernel: tpu_custom_call.1
$region0: #{tpu_custom_call.1}
  #allocation0 [shape = 'u32[]', space=smem, size = 0x4, offset = 0x4, fixed_abs, tag = 'smem constant byte address 0x4 - core index']
  #allocation1 [shape = 'u32[144,128]{1,0:T(1,128)}', space=vmem, size = 0x12000, scoped, tag = 'internal scratch']
  %s0 = inlined_call_operand.vmem [shape: bf16[8,32], index: 0, kind: input, shape index: {}]
  %s1 = inlined_call_operand.vmem [shape: f32[8,32], index: 1, kind: input, shape index: {}]
  %s2 = inlined_call_operand.vmem [shape: f32[8,8], index: 2, kind: input, shape index: {}]
  %s3 = inlined_call_operand.vmem [shape: bf16[2,320,32], index: 3, kind: input, shape index: {}]
  %s4 = inlined_call_operand.vmem [shape: f32[2,8,32], index: 4, kind: input, shape index: {}]
  %s5 = inlined_call_operand.vmem [shape: f32[2,32], index: 5, kind: input, shape index: {}]
  %s6 = inlined_call_operand.hbm [shape: f32[8,32], index: 6, kind: output, shape index: {}]
  %s7 = sld [smem:[#allocation0]]
  $region69: #{tpu_custom_call.1} parent=0
    _
  %s9 = ssub.s32 1, %s7
  %s10 = scalar_select 0, %s9, %s7
  $region1: #{tpu_custom_call.1} parent=0
    #allocation2 [shape = 'u8[4096]{0}', space=vmem, size = 0x1000, scoped, tag = 'output window, operand 0, single buffered']
    #allocation3 [shape = 's32[2]{0}', space=sflag, size = 0x8, scoped, tag = 'scoped memory for tpu_custom_call.1']
    %11 = vsyncpa [#allocation3], 0
    loop: start=0, step=1, limit=4
    $region2: #{tpu_custom_call.1} parent=1 // loop_pre_header
      _
    $region3: #{tpu_custom_call.1} parent=1 // loop_header
      %s13 = sphi 0, %s17
      %p14 = scmp.ge.s32.totalorder %s13, 4
      %s21 = sphi 0, %s21
      %s23 = sphi 0, %s21
      %s24 = sphi 0, %s23
      %s38 = sphi 0, %s24
      %s42 = sphi 0, %s42
      %s44 = sphi 0, %s42
      %s45 = sphi 0, %s44
      %s59 = sphi 0, %s45
      %s63 = sphi 0, %s63
      %s65 = sphi 0, %s63
      %s66 = sphi 0, %s65
      %s80 = sphi 0, %s66
      %s86 = sphi 0, %s88
      %s89 = sphi 0, %s86
      %s90 = sphi 0, %s89
      %s106 = sphi 0, %s90
      %s112 = sphi 0, %s114
      %s115 = sphi 0, %s112
      %s116 = sphi 0, %s115
      %s132 = sphi 0, %s116
      %s136 = sphi 0, %s136
      %s138 = sphi 0, %s136
      %s139 = sphi 0, %s138
      %s153 = sphi 0, %s139
      %s157 = sphi 0, %s157
      %s159 = sphi 0, %s157
      %s160 = sphi 0, %s159
      %s174 = sphi 0, %s160
    $region4: #{tpu_custom_call.1} parent=1 // loop_header_branch
      %16 = sbr.rel (%p14) target = $region8
    $region5: #{tpu_custom_call.1} parent=1 // loop_body
      %s18 = ssub.s32 %s13, 1
      %s19 = ssub.s32 %s13, 2
      %s20 = sadd.s32 %s13, 1
      %s22 = sadd.s32 %s21, 1
      %p25 = scmp.eq.s32.totalorder %s13, 1
      %p26 = scmp.ne.s32.totalorder %s21, %s23
      %p27 = scmp.eq.s32.totalorder %s13, 0
      %p28 = por %p26, %p27
      %p29 = scmp.ne.s32.totalorder %s21, %s23
      %p30 = scmp.eq.s32.totalorder %s18, 1
      %p31 = por %p29, %p30
      %p32 = scmp.ne.s32.totalorder %s23, %s24
      %p33 = scmp.eq.s32.totalorder %s18, 0
      %p34 = por %p32, %p33
      %p35 = scmp.ne.s32.totalorder %s23, %s24
      %p36 = scmp.eq.s32.totalorder %s19, 1
      %p37 = por %p35, %p36
      %p39 = scmp.ne.s32.totalorder %s24, %s38
      %p40 = scmp.eq.s32.totalorder %s19, 0
      %p41 = por %p39, %p40
      %s43 = sadd.s32 %s42, 1
      %p46 = scmp.eq.s32.totalorder %s13, 1
      %p47 = scmp.ne.s32.totalorder %s42, %s44
      %p48 = scmp.eq.s32.totalorder %s13, 0
      %p49 = por %p47, %p48
      %p50 = scmp.ne.s32.totalorder %s42, %s44
      %p51 = scmp.eq.s32.totalorder %s18, 1
      %p52 = por %p50, %p51
      %p53 = scmp.ne.s32.totalorder %s44, %s45
      %p54 = scmp.eq.s32.totalorder %s18, 0
      %p55 = por %p53, %p54
      %p56 = scmp.ne.s32.totalorder %s44, %s45
      %p57 = scmp.eq.s32.totalorder %s19, 1
      %p58 = por %p56, %p57
      %p60 = scmp.ne.s32.totalorder %s45, %s59
      %p61 = scmp.eq.s32.totalorder %s19, 0
      %p62 = por %p60, %p61
      %s64 = sadd.s32 %s63, 1
      %p67 = scmp.eq.s32.totalorder %s13, 1
      %p68 = scmp.ne.s32.totalorder %s63, %s65
      %p69 = scmp.eq.s32.totalorder %s13, 0
      %p70 = por %p68, %p69
      %p71 = scmp.ne.s32.totalorder %s63, %s65
      %p72 = scmp.eq.s32.totalorder %s18, 1
      %p73 = por %p71, %p72
      %p74 = scmp.ne.s32.totalorder %s65, %s66
      %p75 = scmp.eq.s32.totalorder %s18, 0
      %p76 = por %p74, %p75
      %p77 = scmp.ne.s32.totalorder %s65, %s66
      %p78 = scmp.eq.s32.totalorder %s19, 1
      %p79 = por %p77, %p78
      %p81 = scmp.ne.s32.totalorder %s66, %s80
      %p82 = scmp.eq.s32.totalorder %s19, 0
      %p83 = por %p81, %p82
      %s84 = ssub.s32 %s13, %s20
      %p85 = scmp.eq.s32.totalorder %s84, 0
      %s87 = sadd.s32 %s86, 1
      %s88 = scalar_select %p85, %s86, %s87
      %p91 = pneg %p85
      %p92 = scmp.eq.s32.totalorder %s13, 1
      %p93 = por %p91, %p92
      %p94 = scmp.ne.s32.totalorder %s86, %s89
      %p95 = scmp.eq.s32.totalorder %s13, 0
      %p96 = por %p94, %p95
      %p97 = scmp.ne.s32.totalorder %s86, %s89
      %p98 = scmp.eq.s32.totalorder %s18, 1
      %p99 = por %p97, %p98
      %p100 = scmp.ne.s32.totalorder %s89, %s90
      %p101 = scmp.eq.s32.totalorder %s18, 0
      %p102 = por %p100, %p101
      %p103 = scmp.ne.s32.totalorder %s89, %s90
      %p104 = scmp.eq.s32.totalorder %s19, 1
      %p105 = por %p103, %p104
      %p107 = scmp.ne.s32.totalorder %s90, %s106
      %p108 = scmp.eq.s32.totalorder %s19, 0
      %p109 = por %p107, %p108
      %s110 = ssub.s32 %s13, %s20
      %p111 = scmp.eq.s32.totalorder %s110, 0
      %s113 = sadd.s32 %s112, 1
      %s114 = scalar_select %p111, %s112, %s113
      %p117 = pneg %p111
      %p118 = scmp.eq.s32.totalorder %s13, 1
      %p119 = por %p117, %p118
      %p120 = scmp.ne.s32.totalorder %s112, %s115
      %p121 = scmp.eq.s32.totalorder %s13, 0
      %p122 = por %p120, %p121
      %p123 = scmp.ne.s32.totalorder %s112, %s115
      %p124 = scmp.eq.s32.totalorder %s18, 1
      %p125 = por %p123, %p124
      %p126 = scmp.ne.s32.totalorder %s115, %s116
      %p127 = scmp.eq.s32.totalorder %s18, 0
      %p128 = por %p126, %p127
      %p129 = scmp.ne.s32.totalorder %s115, %s116
      %p130 = scmp.eq.s32.totalorder %s19, 1
      %p131 = por %p129, %p130
      %p133 = scmp.ne.s32.totalorder %s116, %s132
      %p134 = scmp.eq.s32.totalorder %s19, 0
      %p135 = por %p133, %p134
      %s137 = sadd.s32 %s136, 1
      %p140 = scmp.eq.s32.totalorder %s13, 1
      %p141 = scmp.ne.s32.totalorder %s136, %s138
      %p142 = scmp.eq.s32.totalorder %s13, 0
      %p143 = por %p141, %p142
      %p144 = scmp.ne.s32.totalorder %s136, %s138
      %p145 = scmp.eq.s32.totalorder %s18, 1
      %p146 = por %p144, %p145
      %p147 = scmp.ne.s32.totalorder %s138, %s139
      %p148 = scmp.eq.s32.totalorder %s18, 0
      %p149 = por %p147, %p148
      %p150 = scmp.ne.s32.totalorder %s138, %s139
      %p151 = scmp.eq.s32.totalorder %s19, 1
      %p152 = por %p150, %p151
      %p154 = scmp.ne.s32.totalorder %s139, %s153
      %p155 = scmp.eq.s32.totalorder %s19, 0
      %p156 = por %p154, %p155
      %s158 = sadd.s32 %s157, 1
      %p161 = scmp.eq.s32.totalorder %s13, 1
      %p162 = scmp.ne.s32.totalorder %s157, %s159
      %p163 = scmp.eq.s32.totalorder %s13, 0
      %p164 = por %p162, %p163
      %p165 = scmp.ne.s32.totalorder %s157, %s159
      %p166 = scmp.eq.s32.totalorder %s18, 1
      %p167 = por %p165, %p166
      %p168 = scmp.ne.s32.totalorder %s159, %s160
      %p169 = scmp.eq.s32.totalorder %s18, 0
      %p170 = por %p168, %p169
      %p171 = scmp.ne.s32.totalorder %s159, %s160
      %p172 = scmp.eq.s32.totalorder %s19, 1
      %p173 = por %p171, %p172
      %p175 = scmp.ne.s32.totalorder %s160, %s174
      %p176 = scmp.eq.s32.totalorder %s19, 0
      %p177 = por %p175, %p176
      %p178 = scmp.le.s32.totalorder 1, %s13
      %p179 = scmp.lt.s32.totalorder %s13, 3
      %p180 = pnand %p178, %p179
      %p181 = pneg %p180
      // Predicated region
      $region9: #{tpu_custom_call.1} parent=5 // pred_check
        _
      $region10: #{tpu_custom_call.1} parent=5 // pred_check_branch
        %183 = sbr.rel (%p180) target = $region12
      $region11: #{tpu_custom_call.1} parent=5 // pred_region
        %s184 = ssub.s32 %s13, 1
        // Predicated region
        $region13: #{tpu_custom_call.1} parent=11 // pred_check
          %p185 = pneg %p34
        $region14: #{tpu_custom_call.1} parent=11 // pred_check_branch
          %187 = sbr.rel (%p185) target = $region16
        $region15: #{tpu_custom_call.1} parent=11 // pred_region
          _
        $region16: #{tpu_custom_call.1} parent=11 // pred_fallthru
          _
        // Predicated region
        $region17: #{tpu_custom_call.1} parent=11 // pred_check
          %p188 = pneg %p55
        $region18: #{tpu_custom_call.1} parent=11 // pred_check_branch
          %190 = sbr.rel (%p188) target = $region20
        $region19: #{tpu_custom_call.1} parent=11 // pred_region
          _
        $region20: #{tpu_custom_call.1} parent=11 // pred_fallthru
          _
        // Predicated region
        $region21: #{tpu_custom_call.1} parent=11 // pred_check
          %p191 = pneg %p76
        $region22: #{tpu_custom_call.1} parent=11 // pred_check_branch
          %193 = sbr.rel (%p191) target = $region24
        $region23: #{tpu_custom_call.1} parent=11 // pred_region
          _
        $region24: #{tpu_custom_call.1} parent=11 // pred_fallthru
          _
        // Predicated region
        $region25: #{tpu_custom_call.1} parent=11 // pred_check
          %p194 = pneg %p149
        $region26: #{tpu_custom_call.1} parent=11 // pred_check_branch
          %196 = sbr.rel (%p194) target = $region28
        $region27: #{tpu_custom_call.1} parent=11 // pred_region
          _
        $region28: #{tpu_custom_call.1} parent=11 // pred_fallthru
          _
      $region12: #{tpu_custom_call.1} parent=5 // pred_fallthru
        _
      %p197 = scmp.lt.s32.totalorder %s13, 2
      // Predicated region
      $region29: #{tpu_custom_call.1} parent=5 // pred_check
        %p198 = pneg %p197
      $region30: #{tpu_custom_call.1} parent=5 // pred_check_branch
        %200 = sbr.rel (%p198) target = $region32
      $region31: #{tpu_custom_call.1} parent=5 // pred_region
        // Predicated region
        $region33: #{tpu_custom_call.1} parent=31 // pred_check
          %p201 = pneg %p96
        $region34: #{tpu_custom_call.1} parent=31 // pred_check_branch
          %203 = sbr.rel (%p201) target = $region36
        $region35: #{tpu_custom_call.1} parent=31 // pred_region
          %p204 = scmp.lt.s32.totalorder %s13, 1
          %s205 = scalar_select %p204, %s13, 1
          %s206 = smul.addr %s205, 40
          %s207 = smul.addr %s206, 4
          %s208 = scalar_lea.vmem %s3, %s207
        $region36: #{tpu_custom_call.1} parent=31 // pred_fallthru
          _
        // Predicated region
        $region37: #{tpu_custom_call.1} parent=31 // pred_check
          %p209 = pneg %p122
        $region38: #{tpu_custom_call.1} parent=31 // pred_check_branch
          %211 = sbr.rel (%p209) target = $region40
        $region39: #{tpu_custom_call.1} parent=31 // pred_region
          %p212 = scmp.lt.s32.totalorder %s13, 1
          %s213 = scalar_select %p212, %s13, 1
          %s214 = smul.addr %s213, 8
          %s215 = scalar_lea.vmem %s4, %s214
        $region40: #{tpu_custom_call.1} parent=31 // pred_fallthru
          _
      $region32: #{tpu_custom_call.1} parent=5 // pred_fallthru
        _
      %p216 = scmp.le.s32.totalorder 1, %s13
      %p217 = scmp.lt.s32.totalorder %s13, 3
      %p218 = pnand %p216, %p217
      %p219 = pneg %p218
      // Predicated region
      $region41: #{tpu_custom_call.1} parent=5 // pred_check
        _
      $region42: #{tpu_custom_call.1} parent=5 // pred_check_branch
        %221 = sbr.rel (%p218) target = $region44
      $region43: #{tpu_custom_call.1} parent=5 // pred_region
        %s222 = ssub.s32 %s13, 1
        %p223 = pneg %p34
        %p224 = pneg %p31
        %p225 = pneg %p55
        %p226 = pneg %p52
        %p227 = pneg %p76
        %p228 = pneg %p73
        %p229 = scmp.lt.s32.totalorder %s18, 1
        %s230 = scalar_select %p229, %s18, 1
        %s231 = smul.addr %s230, 40
        %s232 = smul.addr %s231, 4
        %s233 = scalar_lea.vmem %s3, %s232
        %p234 = pneg %p102
        %p235 = pneg %p99
        %p236 = scmp.lt.s32.totalorder %s18, 1
        %s237 = scalar_select %p236, %s18, 1
        %s238 = smul.addr %s237, 8
        %s239 = scalar_lea.vmem %s4, %s238
        %p240 = pneg %p128
        %p241 = pneg %p125
        %p242 = pneg %p149
        %p243 = pneg %p146
        %p244 = pneg %p170
        %p245 = pneg %p167
        %p246 = scmp.lt.s32.totalorder %s18, 1
        %s247 = scalar_select %p246, %s18, 1
        %s248 = smul.addr %s247, 40
        %s249 = smul.addr %s248, 4
        %s250 = scalar_lea.vmem %s3, %s249
        %p251 = scmp.lt.s32.totalorder %s18, 1
        %s252 = scalar_select %p251, %s18, 1
        %s253 = smul.addr %s252, 8
        %s254 = scalar_lea.vmem %s4, %s253
        %p256 = scmp.eq.s32.totalorder %s18, 0
        // Predicated region
        $region45: #{tpu_custom_call.1} parent=43 // pred_check
          %p257 = pneg %p256
        $region46: #{tpu_custom_call.1} parent=43 // pred_check_branch
          %259 = sbr.rel (%p257) target = $region48
        $region47: #{tpu_custom_call.1} parent=43 // pred_region
          %v260 = vld [vmem:[%s1] sm:$0xff]
          %vm261 = vcmask 261120
          %262 = vst.msk [vmem:[#allocation2] sm:$0xff] %vm261, %v260
        $region48: #{tpu_custom_call.1} parent=43 // pred_fallthru
          _
        %v263 = vld [vmem:[#allocation2] sm:$0xff]
        %v264 = vld [vmem:[%s0] sm:$0xf]
        %v265 = vld [vmem:[%s2] sm:$0xff]
        %v266 = vld [vmem:[%s254] sm:$0xff]
        %v267 = vld [vmem:[%s250] sm:$0xf]
        %v268 = vld [vmem:[%s250 + $0x4] sm:$0xf]
        %v269 = vld [vmem:[%s250 + $0x8] sm:$0xf]
        %v270 = vld [vmem:[%s250 + $0xc] sm:$0xf]
        %v271 = vld [vmem:[%s250 + $0x10] sm:$0xf]
        %v272 = vld [vmem:[%s250 + $0x14] sm:$0xf]
        %v273 = vld [vmem:[%s250 + $0x18] sm:$0xf]
        %v274 = vld [vmem:[%s250 + $0x1c] sm:$0xf]
        %v275 = vld [vmem:[%s250 + $0x20] sm:$0xf]
        %v276 = vld [vmem:[%s250 + $0x24] sm:$0xf]
        %v277 = vld [vmem:[%s250 + $0x28] sm:$0xf]
        %v278 = vld [vmem:[%s250 + $0x2c] sm:$0xf]
        %v279 = vpack.c.bf16 %v263, %v263
        %v292 = vunpack.c.l.b16 %v267
        %v293 = vunpack.c.l.b16 %v268
        %v294 = vunpack.c.l.b16 %v269
        %v295 = vunpack.c.l.b16 %v270
        %v296 = vunpack.c.l.b16 %v271
        %v297 = vunpack.c.l.b16 %v272
        %v298 = vunpack.c.l.b16 %v273
        %v299 = vunpack.c.l.b16 %v274
        %v300 = vunpack.c.l.b16 %v275
        %v301 = vunpack.c.l.b16 %v276
        %v302 = vunpack.c.l.b16 %v277
        %v303 = vunpack.c.l.b16 %v278
        %v304 = vpack.c.b16 %v293, %v292
        %v305 = vpack.c.b16 %v295, %v294
        %v306 = vpack.c.b16 %v297, %v296
        %v307 = vpack.c.b16 %v299, %v298
        %v308 = vpack.c.b16 %v301, %v300
        %v309 = vpack.c.b16 %v303, %v302
        %vm310 = vcmask 261120
        %v312 = vsel %vm310, %v279, 0
        %v315 = vsel %vm310, %v304, 0
        %v318 = vsel %vm310, %v305, 0
        %v321 = vsel %vm310, %v306, 0
        %v324 = vsel %vm310, %v307, 0
        %v327 = vsel %vm310, %v308, 0
        %v330 = vsel %vm310, %v309, 0
        %332 = vmatprep.subr.bf16.mxu0 0
        %333 = vmatpush1.bf16.xpose.msra.mxu0 0
        %334 = vmatprep.subr.bf16.mxu0 0
        %335 = vmatpush1.bf16.xpose.msra.mxu0 0
        %336 = vmatprep.subr.bf16.mxu0 0
        %337 = vmatpush1.bf16.xpose.msra.mxu0 %v330
        %338 = vmatprep.subr.bf16.mxu0 0
        %339 = vmatpush1.bf16.xpose.msra.mxu0 %v327
        %340 = vmatprep.subr.bf16.mxu0 0
        %341 = vmatpush1.bf16.xpose.msra.mxu0 %v324
        %342 = vmatprep.subr.bf16.mxu0 0
        %343 = vmatpush1.bf16.xpose.msra.mxu0 %v321
        %344 = vmatprep.subr.bf16.mxu0 0
        %345 = vmatpush1.bf16.xpose.msra.mxu0 %v318
        %346 = vmatprep.subr.bf16.mxu0 0
        %347 = vmatpush1.bf16.xpose.msra.mxu0 %v315
        %348 = vmatprep.subr.bf16.mxu0 0
        %349 = vmatpush2.bf16.xpose.msra.mxu0 0
        %350 = vmatprep.subr.bf16.mxu0 0
        %351 = vmatpush2.bf16.xpose.msra.mxu0 0
        %352 = vmatprep.subr.bf16.mxu0 0
        %353 = vmatpush2.bf16.xpose.msra.mxu0 0
        %354 = vmatprep.subr.bf16.mxu0 0
        %355 = vmatpush2.bf16.xpose.msra.mxu0 0
        %356 = vmatprep.subr.bf16.mxu0 0
        %357 = vmatpush2.bf16.xpose.msra.mxu0 0
        %358 = vmatprep.subr.bf16.mxu0 0
        %359 = vmatpush2.bf16.xpose.msra.mxu0 0
        %360 = vmatprep.subr.bf16.mxu0 0
        %361 = vmatpush2.bf16.xpose.msra.mxu0 0
        %362 = vmatprep.subr.bf16.mxu0 0
        %363 = vmatpush2.bf16.xpose.msra.mxu0 0
        %364 = vmatprep.mubr.bf16.mxu0 0
        %365 = vmatmul.mubr.bf16.gmra.mxu0 %v312
        %v366 = vpop.f32.mrf.mxu0
        %v367 = vadd.f32 0.0, %v366
        %v368 = vpop.f32.mrf.mxu0
        %v369 = vpop.f32.mrf.mxu0
        %v370 = vpop.f32.mrf.mxu0
        %371 = vdwg.mxu0
        %v372 = vpack.c.bf16 %v367, %v367
        %v373 = vld [vmem:[%s250 + $0x30] sm:$0xf]
        %v374 = vld [vmem:[%s250 + $0x34] sm:$0xf]
        %v375 = vld [vmem:[%s250 + $0x38] sm:$0xf]
        %v376 = vld [vmem:[%s250 + $0x3c] sm:$0xf]
        %378 = vrot.lane.b32.xlu0 %v372, 96
        %v379 = vpop.permute.xlu0 %378
        %vm380 = vcmask 130048
        %v382 = vsel %vm380, %v372, 0
        %v385 = vsel %vm380, %v379, 0
        %387 = vmatprep.subr.bf16.mxu0 0
        %388 = vmatpush1.bf16.xpose.msra.mxu0 0
        %389 = vmatprep.subr.bf16.mxu0 0
        %390 = vmatpush1.bf16.xpose.msra.mxu0 0
        %391 = vmatprep.subr.bf16.mxu0 0
        %392 = vmatpush1.bf16.xpose.msra.mxu0 0
        %393 = vmatprep.subr.bf16.mxu0 0
        %394 = vmatpush1.bf16.xpose.msra.mxu0 0
        %395 = vmatprep.subr.bf16.mxu0 0
        %396 = vmatpush1.bf16.xpose.msra.mxu0 0
        %397 = vmatprep.subr.bf16.mxu0 0
        %398 = vmatpush1.bf16.xpose.msra.mxu0 0
        %399 = vmatprep.subr.bf16.mxu0 0
        %400 = vmatpush1.bf16.xpose.msra.mxu0 0
        %401 = vmatprep.subr.bf16.mxu0 0
        %402 = vmatpush1.bf16.xpose.msra.mxu0 %v385
        %403 = vmatprep.subr.bf16.mxu0 0
        %404 = vmatpush2.bf16.xpose.msra.mxu0 0
        %405 = vmatprep.subr.bf16.mxu0 0
        %406 = vmatpush2.bf16.xpose.msra.mxu0 0
        %407 = vmatprep.subr.bf16.mxu0 0
        %408 = vmatpush2.bf16.xpose.msra.mxu0 0
        %409 = vmatprep.subr.bf16.mxu0 0
        %410 = vmatpush2.bf16.xpose.msra.mxu0 0
        %411 = vmatprep.subr.bf16.mxu0 0
        %412 = vmatpush2.bf16.xpose.msra.mxu0 0
        %413 = vmatprep.subr.bf16.mxu0 0
        %414 = vmatpush2.bf16.xpose.msra.mxu0 0
        %415 = vmatprep.subr.bf16.mxu0 0
        %416 = vmatpush2.bf16.xpose.msra.mxu0 0
        %417 = vmatprep.subr.bf16.mxu0 0
        %418 = vmatpush2.bf16.xpose.msra.mxu0 0
        %419 = vmatprep.mubr.bf16.mxu0 0
        %420 = vmatmul.mubr.bf16.gmra.mxu0 %v382
        %v421 = vpop.f32.mrf.mxu0
        %v422 = vadd.f32 %v265, %v421
        %v423 = vpop.f32.mrf.mxu0
        %v424 = vpop.f32.mrf.mxu0
        %v425 = vpop.f32.mrf.mxu0
        %426 = vdwg.mxu0
        %vm427 = vcmask 64512
        %v428 = vsel %vm427, %v422, -inf
        %429 = vmax.xlane.f32.xlu0 %v428
        %v430 = vpop.xlane.xlu0 %429
        %v431 = vsub.f32 %v422, %v430
        %v432 = vmul.f32 %v431, 1.442695
        %v433 = vpow.pop %v432
        %v434 = vsel %vm427, %v433, 0.0
        %435 = vadd.xlane.f32.xlu0 %v434
        %v436 = vpop.xlane.xlu0 %435
        %v437 = vrcp.pop %v436
        %v438 = vmul.f32 %v433, %v437
        %v439 = vpack.c.bf16 %v438, %v438
        %440 = vrot.lane.b32.xlu0 %v372, 64
        %v441 = vpop.permute.xlu0 %440
        %v443 = vsel %vm427, %v439, 0
        %vm445 = vcmask 1043456
        %v447 = vsel %vm445, %v441, 0
        %449 = vmatprep.subr.bf16.mxu0 0
        %450 = vmatpush1.bf16.msra.mxu0 0
        %451 = vmatprep.subr.bf16.mxu0 0
        %452 = vmatpush1.bf16.msra.mxu0 0
        %453 = vmatprep.subr.bf16.mxu0 0
        %454 = vmatpush1.bf16.msra.mxu0 0
        %455 = vmatprep.subr.bf16.mxu0 0
        %456 = vmatpush1.bf16.msra.mxu0 0
        %457 = vmatprep.subr.bf16.mxu0 0
        %458 = vmatpush1.bf16.msra.mxu0 0
        %459 = vmatprep.subr.bf16.mxu0 0
        %460 = vmatpush1.bf16.msra.mxu0 0
        %461 = vmatprep.subr.bf16.mxu0 0
        %462 = vmatpush1.bf16.msra.mxu0 0
        %463 = vmatprep.subr.bf16.mxu0 0
        %464 = vmatpush1.bf16.msra.mxu0 %v447
        %465 = vmatprep.subr.bf16.mxu0 0
        %466 = vmatpush2.bf16.msra.mxu0 0
        %467 = vmatprep.subr.bf16.mxu0 0
        %468 = vmatpush2.bf16.msra.mxu0 0
        %469 = vmatprep.subr.bf16.mxu0 0
        %470 = vmatpush2.bf16.msra.mxu0 0
        %471 = vmatprep.subr.bf16.mxu0 0
        %472 = vmatpush2.bf16.msra.mxu0 0
        %473 = vmatprep.subr.bf16.mxu0 0
        %474 = vmatpush2.bf16.msra.mxu0 0
        %475 = vmatprep.subr.bf16.mxu0 0
        %476 = vmatpush2.bf16.msra.mxu0 0
        %477 = vmatprep.subr.bf16.mxu0 0
        %478 = vmatpush2.bf16.msra.mxu0 0
        %479 = vmatprep.subr.bf16.mxu0 0
        %480 = vmatpush2.bf16.msra.mxu0 0
        %481 = vmatprep.mubr.bf16.mxu0 0
        %482 = vmatmul.mubr.bf16.gmra.mxu0 %v443
        %v483 = vpop.f32.mrf.mxu0
        %v484 = vadd.f32 0.0, %v483
        %v485 = vpop.f32.mrf.mxu0
        %v486 = vpop.f32.mrf.mxu0
        %v487 = vpop.f32.mrf.mxu0
        %488 = vdwg.mxu0
        %v489 = vpack.c.bf16 %v484, %v484
        %490 = vrot.lane.b32.xlu0 %v372, 112
        %v491 = vpop.permute.xlu0 %490
        %492 = vrot.lane.b32.xlu0 %v372, 80
        %v493 = vpop.permute.xlu0 %492
        %v495 = vsel %vm380, %v491, 0
        %v498 = vsel %vm380, %v493, 0
        %500 = vmatprep.subr.bf16.mxu0 0
        %501 = vmatpush1.bf16.xpose.msra.mxu0 0
        %502 = vmatprep.subr.bf16.mxu0 0
        %503 = vmatpush1.bf16.xpose.msra.mxu0 0
        %504 = vmatprep.subr.bf16.mxu0 0
        %505 = vmatpush1.bf16.xpose.msra.mxu0 0
        %506 = vmatprep.subr.bf16.mxu0 0
        %507 = vmatpush1.bf16.xpose.msra.mxu0 0
        %508 = vmatprep.subr.bf16.mxu0 0
        %509 = vmatpush1.bf16.xpose.msra.mxu0 0
        %510 = vmatprep.subr.bf16.mxu0 0
        %511 = vmatpush1.bf16.xpose.msra.mxu0 0
        %512 = vmatprep.subr.bf16.mxu0 0
        %513 = vmatpush1.bf16.xpose.msra.mxu0 0
        %514 = vmatprep.subr.bf16.mxu0 0
        %515 = vmatpush1.bf16.xpose.msra.mxu0 %v498
        %516 = vmatprep.subr.bf16.mxu0 0
        %517 = vmatpush2.bf16.xpose.msra.mxu0 0
        %518 = vmatprep.subr.bf16.mxu0 0
        %519 = vmatpush2.bf16.xpose.msra.mxu0 0
        %520 = vmatprep.subr.bf16.mxu0 0
        %521 = vmatpush2.bf16.xpose.msra.mxu0 0
        %522 = vmatprep.subr.bf16.mxu0 0
        %523 = vmatpush2.bf16.xpose.msra.mxu0 0
        %524 = vmatprep.subr.bf16.mxu0 0
        %525 = vmatpush2.bf16.xpose.msra.mxu0 0
        %526 = vmatprep.subr.bf16.mxu0 0
        %527 = vmatpush2.bf16.xpose.msra.mxu0 0
        %528 = vmatprep.subr.bf16.mxu0 0
        %529 = vmatpush2.bf16.xpose.msra.mxu0 0
        %530 = vmatprep.subr.bf16.mxu0 0
        %531 = vmatpush2.bf16.xpose.msra.mxu0 0
        %532 = vmatprep.mubr.bf16.mxu0 0
        %533 = vmatmul.mubr.bf16.gmra.mxu0 %v495
        %v534 = vpop.f32.mrf.mxu0
        %v535 = vadd.f32 %v265, %v534
        %v536 = vpop.f32.mrf.mxu0
        %v537 = vpop.f32.mrf.mxu0
        %v538 = vpop.f32.mrf.mxu0
        %539 = vdwg.mxu0
        %v540 = vsel %vm427, %v535, -inf
        %541 = vmax.xlane.f32.xlu0 %v540
        %v542 = vpop.xlane.xlu0 %541
        %v543 = vsub.f32 %v535, %v542
        %v544 = vmul.f32 %v543, 1.442695
        %v545 = vpow.pop %v544
        %v546 = vsel %vm427, %v545, 0.0
        %547 = vadd.xlane.f32.xlu0 %v546
        %v548 = vpop.xlane.xlu0 %547
        %v549 = vrcp.pop %v548
        %v550 = vmul.f32 %v545, %v549
        %v551 = vpack.c.bf16 %v550, %v550
        %552 = vrot.lane.b32.xlu0 %v372, 48
        %v553 = vpop.permute.xlu0 %552
        %v555 = vsel %vm427, %v551, 0
        %v558 = vsel %vm445, %v553, 0
        %560 = vmatprep.subr.bf16.mxu0 0
        %561 = vmatpush1.bf16.msra.mxu0 0
        %562 = vmatprep.subr.bf16.mxu0 0
        %563 = vmatpush1.bf16.msra.mxu0 0
        %564 = vmatprep.subr.bf16.mxu0 0
        %565 = vmatpush1.bf16.msra.mxu0 0
        %566 = vmatprep.subr.bf16.mxu0 0
        %567 = vmatpush1.bf16.msra.mxu0 0
        %568 = vmatprep.subr.bf16.mxu0 0
        %569 = vmatpush1.bf16.msra.mxu0 0
        %570 = vmatprep.subr.bf16.mxu0 0
        %571 = vmatpush1.bf16.msra.mxu0 0
        %572 = vmatprep.subr.bf16.mxu0 0
        %573 = vmatpush1.bf16.msra.mxu0 0
        %574 = vmatprep.subr.bf16.mxu0 0
        %575 = vmatpush1.bf16.msra.mxu0 %v558
        %576 = vmatprep.subr.bf16.mxu0 0
        %577 = vmatpush2.bf16.msra.mxu0 0
        %578 = vmatprep.subr.bf16.mxu0 0
        %579 = vmatpush2.bf16.msra.mxu0 0
        %580 = vmatprep.subr.bf16.mxu0 0
        %581 = vmatpush2.bf16.msra.mxu0 0
        %582 = vmatprep.subr.bf16.mxu0 0
        %583 = vmatpush2.bf16.msra.mxu0 0
        %584 = vmatprep.subr.bf16.mxu0 0
        %585 = vmatpush2.bf16.msra.mxu0 0
        %586 = vmatprep.subr.bf16.mxu0 0
        %587 = vmatpush2.bf16.msra.mxu0 0
        %588 = vmatprep.subr.bf16.mxu0 0
        %589 = vmatpush2.bf16.msra.mxu0 0
        %590 = vmatprep.subr.bf16.mxu0 0
        %591 = vmatpush2.bf16.msra.mxu0 0
        %592 = vmatprep.mubr.bf16.mxu0 0
        %593 = vmatmul.mubr.bf16.gmra.mxu0 %v555
        %v594 = vpop.f32.mrf.mxu0
        %v595 = vadd.f32 0.0, %v594
        %v596 = vpop.f32.mrf.mxu0
        %v597 = vpop.f32.mrf.mxu0
        %v598 = vpop.f32.mrf.mxu0
        %599 = vdwg.mxu0
        %v600 = vpack.c.bf16 %v595, %v595
        %v603 = vunpack.c.l.b16 %v375
        %v604 = vunpack.c.l.b16 %v376
        %v605 = vpack.c.b16 %v604, %v603
        %v608 = vsel %vm380, %v600, 0
        %610 = vmatprep.subr.bf16.mxu0 0
        %611 = vmatpush1.bf16.msra.mxu0 0
        %612 = vmatprep.subr.bf16.mxu0 0
        %613 = vmatpush1.bf16.msra.mxu0 0
        %614 = vmatprep.subr.bf16.mxu0 0
        %615 = vmatpush1.bf16.msra.mxu0 0
        %616 = vmatprep.subr.bf16.mxu0 0
        %617 = vmatpush1.bf16.msra.mxu0 0
        %618 = vmatprep.subr.bf16.mxu0 0
        %619 = vmatpush1.bf16.msra.mxu0 0
        %620 = vmatprep.subr.bf16.mxu0 0
        %621 = vmatpush1.bf16.msra.mxu0 0
        %622 = vmatprep.subr.bf16.mxu0 0
        %623 = vmatpush1.bf16.msra.mxu0 0
        %624 = vmatprep.subr.bf16.mxu0 0
        %625 = vmatpush1.bf16.msra.mxu0 %v605
        %626 = vmatprep.subr.bf16.mxu0 0
        %627 = vmatpush2.bf16.msra.mxu0 0
        %628 = vmatprep.subr.bf16.mxu0 0
        %629 = vmatpush2.bf16.msra.mxu0 0
        %630 = vmatprep.subr.bf16.mxu0 0
        %631 = vmatpush2.bf16.msra.mxu0 0
        %632 = vmatprep.subr.bf16.mxu0 0
        %633 = vmatpush2.bf16.msra.mxu0 0
        %634 = vmatprep.subr.bf16.mxu0 0
        %635 = vmatpush2.bf16.msra.mxu0 0
        %636 = vmatprep.subr.bf16.mxu0 0
        %637 = vmatpush2.bf16.msra.mxu0 0
        %638 = vmatprep.subr.bf16.mxu0 0
        %639 = vmatpush2.bf16.msra.mxu0 0
        %640 = vmatprep.subr.bf16.mxu0 0
        %641 = vmatpush2.bf16.msra.mxu0 0
        %642 = vmatprep.mubr.bf16.mxu0 0
        %643 = vmatmul.mubr.bf16.gmra.mxu0 %v608
        %v644 = vpop.f32.mrf.mxu0
        %v645 = vadd.f32 0.0, %v644
        %v646 = vpop.f32.mrf.mxu0
        %v647 = vpop.f32.mrf.mxu0
        %v648 = vpop.f32.mrf.mxu0
        %649 = vdwg.mxu0
        %v652 = vunpack.c.l.b16 %v373
        %v653 = vunpack.c.l.b16 %v374
        %v654 = vpack.c.b16 %v653, %v652
        %v657 = vsel %vm380, %v489, 0
        %659 = vmatprep.subr.bf16.mxu0 0
        %660 = vmatpush1.bf16.msra.mxu0 0
        %661 = vmatprep.subr.bf16.mxu0 0
        %662 = vmatpush1.bf16.msra.mxu0 0
        %663 = vmatprep.subr.bf16.mxu0 0
        %664 = vmatpush1.bf16.msra.mxu0 0
        %665 = vmatprep.subr.bf16.mxu0 0
        %666 = vmatpush1.bf16.msra.mxu0 0
        %667 = vmatprep.subr.bf16.mxu0 0
        %668 = vmatpush1.bf16.msra.mxu0 0
        %669 = vmatprep.subr.bf16.mxu0 0
        %670 = vmatpush1.bf16.msra.mxu0 0
        %671 = vmatprep.subr.bf16.mxu0 0
        %672 = vmatpush1.bf16.msra.mxu0 0
        %673 = vmatprep.subr.bf16.mxu0 0
        %674 = vmatpush1.bf16.msra.mxu0 %v654
        %675 = vmatprep.subr.bf16.mxu0 0
        %676 = vmatpush2.bf16.msra.mxu0 0
        %677 = vmatprep.subr.bf16.mxu0 0
        %678 = vmatpush2.bf16.msra.mxu0 0
        %679 = vmatprep.subr.bf16.mxu0 0
        %680 = vmatpush2.bf16.msra.mxu0 0
        %681 = vmatprep.subr.bf16.mxu0 0
        %682 = vmatpush2.bf16.msra.mxu0 0
        %683 = vmatprep.subr.bf16.mxu0 0
        %684 = vmatpush2.bf16.msra.mxu0 0
        %685 = vmatprep.subr.bf16.mxu0 0
        %686 = vmatpush2.bf16.msra.mxu0 0
        %687 = vmatprep.subr.bf16.mxu0 0
        %688 = vmatpush2.bf16.msra.mxu0 0
        %689 = vmatprep.subr.bf16.mxu0 0
        %690 = vmatpush2.bf16.msra.mxu0 0
        %691 = vmatprep.mubr.bf16.mxu0 0
        %692 = vmatmul.mubr.bf16.gmra.mxu0 %v657
        %v693 = vpop.f32.mrf.mxu0
        %v694 = vadd.f32 %v645, %v693
        %v695 = vpop.f32.mrf.mxu0
        %v696 = vpop.f32.mrf.mxu0
        %v697 = vpop.f32.mrf.mxu0
        %698 = vdwg.mxu0
        %v699 = vadd.f32 %v694, %v263
        %v700 = vsel %vm310, %v699, 0.0
        %701 = vadd.xlane.f32.xlu0 %v700
        %v702 = vpop.xlane.xlu0 %701
        %v703 = vrcp.pop 32.0
        %v704 = vmul.f32 %v702, %v703
        %v705 = vsub.f32 %v699, %v704
        %v706 = vmul.f32 %v705, %v705
        %v707 = vsel %vm310, %v706, 0.0
        %708 = vadd.xlane.f32.xlu0 %v707
        %v709 = vpop.xlane.xlu0 %708
        %v710 = vmul.f32 %v709, %v703
        %v711 = vadd.f32 %v710, 1e-05
        %v712 = vrsqrt.pop %v711
        %v713 = vmul.f32 %v705, %v712
        %v714 = vlaneseq
        %v715 = vshrl.u32 %v714, 7
        %v716 = vsub.s32 0, %v715
        %v717 = vrot.slane %v266, %v716
        %v718 = vmul.f32 %v713, %v717
        %v719 = vlaneseq
        %v720 = vshrl.u32 %v719, 7
        %v721 = vsub.s32 1, %v720
        %v722 = vrot.slane %v266, %v721
        %v723 = vadd.f32 %v718, %v722
        %v724 = vld [vmem:[%s250 + $0x40] sm:$0xf]
        %v725 = vld [vmem:[%s250 + $0x44] sm:$0xf]
        %v726 = vld [vmem:[%s250 + $0x48] sm:$0xf]
        %v727 = vld [vmem:[%s250 + $0x4c] sm:$0xf]
        %v728 = vpack.c.bf16 %v723, %v723
        %v733 = vunpack.c.l.b16 %v724
        %v734 = vunpack.c.l.b16 %v725
        %v735 = vunpack.c.l.b16 %v726
        %v736 = vunpack.c.l.b16 %v727
        %v737 = vpack.c.b16 %v734, %v733
        %v738 = vpack.c.b16 %v736, %v735
        %v740 = vsel %vm310, %v728, 0
        %v743 = vsel %vm310, %v737, 0
        %v746 = vsel %vm310, %v738, 0
        %748 = vmatprep.subr.bf16.mxu0 0
        %749 = vmatpush1.bf16.xpose.msra.mxu0 0
        %750 = vmatprep.subr.bf16.mxu0 0
        %751 = vmatpush1.bf16.xpose.msra.mxu0 0
        %752 = vmatprep.subr.bf16.mxu0 0
        %753 = vmatpush1.bf16.xpose.msra.mxu0 0
        %754 = vmatprep.subr.bf16.mxu0 0
        %755 = vmatpush1.bf16.xpose.msra.mxu0 0
        %756 = vmatprep.subr.bf16.mxu0 0
        %757 = vmatpush1.bf16.xpose.msra.mxu0 0
        %758 = vmatprep.subr.bf16.mxu0 0
        %759 = vmatpush1.bf16.xpose.msra.mxu0 0
        %760 = vmatprep.subr.bf16.mxu0 0
        %761 = vmatpush1.bf16.xpose.msra.mxu0 %v746
        %762 = vmatprep.subr.bf16.mxu0 0
        %763 = vmatpush1.bf16.xpose.msra.mxu0 %v743
        %764 = vmatprep.subr.bf16.mxu0 0
        %765 = vmatpush2.bf16.xpose.msra.mxu0 0
        %766 = vmatprep.subr.bf16.mxu0 0
        %767 = vmatpush2.bf16.xpose.msra.mxu0 0
        %768 = vmatprep.subr.bf16.mxu0 0
        %769 = vmatpush2.bf16.xpose.msra.mxu0 0
        %770 = vmatprep.subr.bf16.mxu0 0
        %771 = vmatpush2.bf16.xpose.msra.mxu0 0
        %772 = vmatprep.subr.bf16.mxu0 0
        %773 = vmatpush2.bf16.xpose.msra.mxu0 0
        %774 = vmatprep.subr.bf16.mxu0 0
        %775 = vmatpush2.bf16.xpose.msra.mxu0 0
        %776 = vmatprep.subr.bf16.mxu0 0
        %777 = vmatpush2.bf16.xpose.msra.mxu0 0
        %778 = vmatprep.subr.bf16.mxu0 0
        %779 = vmatpush2.bf16.xpose.msra.mxu0 0
        %780 = vmatprep.mubr.bf16.mxu0 0
        %781 = vmatmul.mubr.bf16.gmra.mxu0 %v740
        %v782 = vpop.f32.mrf.mxu0
        %v783 = vadd.f32 0.0, %v782
        %v784 = vpop.f32.mrf.mxu0
        %v785 = vpop.f32.mrf.mxu0
        %v786 = vpop.f32.mrf.mxu0
        %787 = vdwg.mxu0
        %v788 = vpack.c.bf16 %v783, %v783
        %v789 = vld [vmem:[%s250 + $0x50] sm:$0xf]
        %v790 = vld [vmem:[%s250 + $0x54] sm:$0xf]
        %v791 = vld [vmem:[%s250 + $0x58] sm:$0xf]
        %v792 = vld [vmem:[%s250 + $0x5c] sm:$0xf]
        %v793 = vld [vmem:[%s250 + $0x60] sm:$0xf]
        %v794 = vld [vmem:[%s250 + $0x64] sm:$0xf]
        %v795 = vld [vmem:[%s250 + $0x68] sm:$0xf]
        %v796 = vld [vmem:[%s250 + $0x6c] sm:$0xf]
        %v805 = vunpack.c.l.b16 %v789
        %v806 = vunpack.c.l.b16 %v790
        %v807 = vunpack.c.l.b16 %v791
        %v808 = vunpack.c.l.b16 %v792
        %v809 = vunpack.c.l.b16 %v793
        %v810 = vunpack.c.l.b16 %v794
        %v811 = vunpack.c.l.b16 %v795
        %v812 = vunpack.c.l.b16 %v796
        %v813 = vpack.c.b16 %v806, %v805
        %v814 = vpack.c.b16 %v808, %v807
        %v815 = vpack.c.b16 %v810, %v809
        %v816 = vpack.c.b16 %v812, %v811
        %v818 = vsel %vm310, %v264, 0
        %v821 = vsel %vm310, %v813, 0
        %v824 = vsel %vm310, %v814, 0
        %v827 = vsel %vm310, %v815, 0
        %v830 = vsel %vm310, %v816, 0
        %832 = vmatprep.subr.bf16.mxu0 0
        %833 = vmatpush1.bf16.xpose.msra.mxu0 0
        %834 = vmatprep.subr.bf16.mxu0 0
        %835 = vmatpush1.bf16.xpose.msra.mxu0 0
        %836 = vmatprep.subr.bf16.mxu0 0
        %837 = vmatpush1.bf16.xpose.msra.mxu0 0
        %838 = vmatprep.subr.bf16.mxu0 0
        %839 = vmatpush1.bf16.xpose.msra.mxu0 0
        %840 = vmatprep.subr.bf16.mxu0 0
        %841 = vmatpush1.bf16.xpose.msra.mxu0 %v830
        %842 = vmatprep.subr.bf16.mxu0 0
        %843 = vmatpush1.bf16.xpose.msra.mxu0 %v827
        %844 = vmatprep.subr.bf16.mxu0 0
        %845 = vmatpush1.bf16.xpose.msra.mxu0 %v824
        %846 = vmatprep.subr.bf16.mxu0 0
        %847 = vmatpush1.bf16.xpose.msra.mxu0 %v821
        %848 = vmatprep.subr.bf16.mxu0 0
        %849 = vmatpush2.bf16.xpose.msra.mxu0 0
        %850 = vmatprep.subr.bf16.mxu0 0
        %851 = vmatpush2.bf16.xpose.msra.mxu0 0
        %852 = vmatprep.subr.bf16.mxu0 0
        %853 = vmatpush2.bf16.xpose.msra.mxu0 0
        %854 = vmatprep.subr.bf16.mxu0 0
        %855 = vmatpush2.bf16.xpose.msra.mxu0 0
        %856 = vmatprep.subr.bf16.mxu0 0
        %857 = vmatpush2.bf16.xpose.msra.mxu0 0
        %858 = vmatprep.subr.bf16.mxu0 0
        %859 = vmatpush2.bf16.xpose.msra.mxu0 0
        %860 = vmatprep.subr.bf16.mxu0 0
        %861 = vmatpush2.bf16.xpose.msra.mxu0 0
        %862 = vmatprep.subr.bf16.mxu0 0
        %863 = vmatpush2.bf16.xpose.msra.mxu0 0
        %864 = vmatprep.mubr.bf16.mxu0 0
        %865 = vmatmul.mubr.bf16.gmra.mxu0 %v818
        %v866 = vpop.f32.mrf.mxu0
        %v867 = vadd.f32 0.0, %v866
        %v868 = vpop.f32.mrf.mxu0
        %v869 = vpop.f32.mrf.mxu0
        %v870 = vpop.f32.mrf.mxu0
        %871 = vdwg.mxu0
        %v872 = vpack.c.bf16 %v867, %v867
        %v873 = vld [vmem:[%s250 + $0x70] sm:$0xf]
        %v874 = vld [vmem:[%s250 + $0x74] sm:$0xf]
        %v875 = vld [vmem:[%s250 + $0x78] sm:$0xf]
        %v876 = vld [vmem:[%s250 + $0x7c] sm:$0xf]
        %v878 = vsel %vm380, %v788, 0
        %v881 = vsel %vm380, %v872, 0
        %883 = vmatprep.subr.bf16.mxu0 0
        %884 = vmatpush1.bf16.xpose.msra.mxu0 0
        %885 = vmatprep.subr.bf16.mxu0 0
        %886 = vmatpush1.bf16.xpose.msra.mxu0 0
        %887 = vmatprep.subr.bf16.mxu0 0
        %888 = vmatpush1.bf16.xpose.msra.mxu0 0
        %889 = vmatprep.subr.bf16.mxu0 0
        %890 = vmatpush1.bf16.xpose.msra.mxu0 0
        %891 = vmatprep.subr.bf16.mxu0 0
        %892 = vmatpush1.bf16.xpose.msra.mxu0 0
        %893 = vmatprep.subr.bf16.mxu0 0
        %894 = vmatpush1.bf16.xpose.msra.mxu0 0
        %895 = vmatprep.subr.bf16.mxu0 0
        %896 = vmatpush1.bf16.xpose.msra.mxu0 0
        %897 = vmatprep.subr.bf16.mxu0 0
        %898 = vmatpush1.bf16.xpose.msra.mxu0 %v881
        %899 = vmatprep.subr.bf16.mxu0 0
        %900 = vmatpush2.bf16.xpose.msra.mxu0 0
        %901 = vmatprep.subr.bf16.mxu0 0
        %902 = vmatpush2.bf16.xpose.msra.mxu0 0
        %903 = vmatprep.subr.bf16.mxu0 0
        %904 = vmatpush2.bf16.xpose.msra.mxu0 0
        %905 = vmatprep.subr.bf16.mxu0 0
        %906 = vmatpush2.bf16.xpose.msra.mxu0 0
        %907 = vmatprep.subr.bf16.mxu0 0
        %908 = vmatpush2.bf16.xpose.msra.mxu0 0
        %909 = vmatprep.subr.bf16.mxu0 0
        %910 = vmatpush2.bf16.xpose.msra.mxu0 0
        %911 = vmatprep.subr.bf16.mxu0 0
        %912 = vmatpush2.bf16.xpose.msra.mxu0 0
        %913 = vmatprep.subr.bf16.mxu0 0
        %914 = vmatpush2.bf16.xpose.msra.mxu0 0
        %915 = vmatprep.mubr.bf16.mxu0 0
        %916 = vmatmul.mubr.bf16.gmra.mxu0 %v878
        %v917 = vpop.f32.mrf.mxu0
        %v918 = vadd.f32 0.0, %v917
        %v919 = vpop.f32.mrf.mxu0
        %v920 = vpop.f32.mrf.mxu0
        %v921 = vpop.f32.mrf.mxu0
        %922 = vdwg.mxu0
        %v923 = vsel %vm427, %v918, -inf
        %924 = vmax.xlane.f32.xlu0 %v923
        %v925 = vpop.xlane.xlu0 %924
        %v926 = vsub.f32 %v918, %v925
        %v927 = vmul.f32 %v926, 1.442695
        %v928 = vpow.pop %v927
        %v929 = vsel %vm427, %v928, 0.0
        %930 = vadd.xlane.f32.xlu0 %v929
        %v931 = vpop.xlane.xlu0 %930
        %v932 = vrcp.pop %v931
        %v933 = vmul.f32 %v928, %v932
        %v934 = vpack.c.bf16 %v933, %v933
        %936 = vrot.lane.b32.xlu0 %v872, 96
        %v937 = vpop.permute.xlu0 %936
        %v939 = vsel %vm427, %v934, 0
        %v942 = vsel %vm445, %v937, 0
        %944 = vmatprep.subr.bf16.mxu0 0
        %945 = vmatpush1.bf16.msra.mxu0 0
        %946 = vmatprep.subr.bf16.mxu0 0
        %947 = vmatpush1.bf16.msra.mxu0 0
        %948 = vmatprep.subr.bf16.mxu0 0
        %949 = vmatpush1.bf16.msra.mxu0 0
        %950 = vmatprep.subr.bf16.mxu0 0
        %951 = vmatpush1.bf16.msra.mxu0 0
        %952 = vmatprep.subr.bf16.mxu0 0
        %953 = vmatpush1.bf16.msra.mxu0 0
        %954 = vmatprep.subr.bf16.mxu0 0
        %955 = vmatpush1.bf16.msra.mxu0 0
        %956 = vmatprep.subr.bf16.mxu0 0
        %957 = vmatpush1.bf16.msra.mxu0 0
        %958 = vmatprep.subr.bf16.mxu0 0
        %959 = vmatpush1.bf16.msra.mxu0 %v942
        %960 = vmatprep.subr.bf16.mxu0 0
        %961 = vmatpush2.bf16.msra.mxu0 0
        %962 = vmatprep.subr.bf16.mxu0 0
        %963 = vmatpush2.bf16.msra.mxu0 0
        %964 = vmatprep.subr.bf16.mxu0 0
        %965 = vmatpush2.bf16.msra.mxu0 0
        %966 = vmatprep.subr.bf16.mxu0 0
        %967 = vmatpush2.bf16.msra.mxu0 0
        %968 = vmatprep.subr.bf16.mxu0 0
        %969 = vmatpush2.bf16.msra.mxu0 0
        %970 = vmatprep.subr.bf16.mxu0 0
        %971 = vmatpush2.bf16.msra.mxu0 0
        %972 = vmatprep.subr.bf16.mxu0 0
        %973 = vmatpush2.bf16.msra.mxu0 0
        %974 = vmatprep.subr.bf16.mxu0 0
        %975 = vmatpush2.bf16.msra.mxu0 0
        %976 = vmatprep.mubr.bf16.mxu0 0
        %977 = vmatmul.mubr.bf16.gmra.mxu0 %v939
        %v978 = vpop.f32.mrf.mxu0
        %v979 = vadd.f32 0.0, %v978
        %v980 = vpop.f32.mrf.mxu0
        %v981 = vpop.f32.mrf.mxu0
        %v982 = vpop.f32.mrf.mxu0
        %983 = vdwg.mxu0
        %v984 = vpack.c.bf16 %v979, %v979
        %986 = vrot.lane.b32.xlu0 %v788, 112
        %v987 = vpop.permute.xlu0 %986
        %988 = vrot.lane.b32.xlu0 %v872, 112
        %v989 = vpop.permute.xlu0 %988
        %v991 = vsel %vm380, %v987, 0
        %v994 = vsel %vm380, %v989, 0
        %996 = vmatprep.subr.bf16.mxu0 0
        %997 = vmatpush1.bf16.xpose.msra.mxu0 0
        %998 = vmatprep.subr.bf16.mxu0 0
        %999 = vmatpush1.bf16.xpose.msra.mxu0 0
        %1000 = vmatprep.subr.bf16.mxu0 0
        %1001 = vmatpush1.bf16.xpose.msra.mxu0 0
        %1002 = vmatprep.subr.bf16.mxu0 0
        %1003 = vmatpush1.bf16.xpose.msra.mxu0 0
        %1004 = vmatprep.subr.bf16.mxu0 0
        %1005 = vmatpush1.bf16.xpose.msra.mxu0 0
        %1006 = vmatprep.subr.bf16.mxu0 0
        %1007 = vmatpush1.bf16.xpose.msra.mxu0 0
        %1008 = vmatprep.subr.bf16.mxu0 0
        %1009 = vmatpush1.bf16.xpose.msra.mxu0 0
        %1010 = vmatprep.subr.bf16.mxu0 0
        %1011 = vmatpush1.bf16.xpose.msra.mxu0 %v994
        %1012 = vmatprep.subr.bf16.mxu0 0
        %1013 = vmatpush2.bf16.xpose.msra.mxu0 0
        %1014 = vmatprep.subr.bf16.mxu0 0
        %1015 = vmatpush2.bf16.xpose.msra.mxu0 0
        %1016 = vmatprep.subr.bf16.mxu0 0
        %1017 = vmatpush2.bf16.xpose.msra.mxu0 0
        %1018 = vmatprep.subr.bf16.mxu0 0
        %1019 = vmatpush2.bf16.xpose.msra.mxu0 0
        %1020 = vmatprep.subr.bf16.mxu0 0
        %1021 = vmatpush2.bf16.xpose.msra.mxu0 0
        %1022 = vmatprep.subr.bf16.mxu0 0
        %1023 = vmatpush2.bf16.xpose.msra.mxu0 0
        %1024 = vmatprep.subr.bf16.mxu0 0
        %1025 = vmatpush2.bf16.xpose.msra.mxu0 0
        %1026 = vmatprep.subr.bf16.mxu0 0
        %1027 = vmatpush2.bf16.xpose.msra.mxu0 0
        %1028 = vmatprep.mubr.bf16.mxu0 0
        %1029 = vmatmul.mubr.bf16.gmra.mxu0 %v991
        %v1030 = vpop.f32.mrf.mxu0
        %v1031 = vadd.f32 0.0, %v1030
        %v1032 = vpop.f32.mrf.mxu0
        %v1033 = vpop.f32.mrf.mxu0
        %v1034 = vpop.f32.mrf.mxu0
        %1035 = vdwg.mxu0
        %v1036 = vsel %vm427, %v1031, -inf
        %1037 = vmax.xlane.f32.xlu0 %v1036
        %v1038 = vpop.xlane.xlu0 %1037
        %v1039 = vsub.f32 %v1031, %v1038
        %v1040 = vmul.f32 %v1039, 1.442695
        %v1041 = vpow.pop %v1040
        %v1042 = vsel %vm427, %v1041, 0.0
        %1043 = vadd.xlane.f32.xlu0 %v1042
        %v1044 = vpop.xlane.xlu0 %1043
        %v1045 = vrcp.pop %v1044
        %v1046 = vmul.f32 %v1041, %v1045
        %v1047 = vpack.c.bf16 %v1046, %v1046
        %1048 = vrot.lane.b32.xlu0 %v872, 80
        %v1049 = vpop.permute.xlu0 %1048
        %v1051 = vsel %vm427, %v1047, 0
        %v1054 = vsel %vm445, %v1049, 0
        %1056 = vmatprep.subr.bf16.mxu0 0
        %1057 = vmatpush1.bf16.msra.mxu0 0
        %1058 = vmatprep.subr.bf16.mxu0 0
        %1059 = vmatpush1.bf16.msra.mxu0 0
        %1060 = vmatprep.subr.bf16.mxu0 0
        %1061 = vmatpush1.bf16.msra.mxu0 0
        %1062 = vmatprep.subr.bf16.mxu0 0
        %1063 = vmatpush1.bf16.msra.mxu0 0
        %1064 = vmatprep.subr.bf16.mxu0 0
        %1065 = vmatpush1.bf16.msra.mxu0 0
        %1066 = vmatprep.subr.bf16.mxu0 0
        %1067 = vmatpush1.bf16.msra.mxu0 0
        %1068 = vmatprep.subr.bf16.mxu0 0
        %1069 = vmatpush1.bf16.msra.mxu0 0
        %1070 = vmatprep.subr.bf16.mxu0 0
        %1071 = vmatpush1.bf16.msra.mxu0 %v1054
        %1072 = vmatprep.subr.bf16.mxu0 0
        %1073 = vmatpush2.bf16.msra.mxu0 0
        %1074 = vmatprep.subr.bf16.mxu0 0
        %1075 = vmatpush2.bf16.msra.mxu0 0
        %1076 = vmatprep.subr.bf16.mxu0 0
        %1077 = vmatpush2.bf16.msra.mxu0 0
        %1078 = vmatprep.subr.bf16.mxu0 0
        %1079 = vmatpush2.bf16.msra.mxu0 0
        %1080 = vmatprep.subr.bf16.mxu0 0
        %1081 = vmatpush2.bf16.msra.mxu0 0
        %1082 = vmatprep.subr.bf16.mxu0 0
        %1083 = vmatpush2.bf16.msra.mxu0 0
        %1084 = vmatprep.subr.bf16.mxu0 0
        %1085 = vmatpush2.bf16.msra.mxu0 0
        %1086 = vmatprep.subr.bf16.mxu0 0
        %1087 = vmatpush2.bf16.msra.mxu0 0
        %1088 = vmatprep.mubr.bf16.mxu0 0
        %1089 = vmatmul.mubr.bf16.gmra.mxu0 %v1051
        %v1090 = vpop.f32.mrf.mxu0
        %v1091 = vadd.f32 0.0, %v1090
        %v1092 = vpop.f32.mrf.mxu0
        %v1093 = vpop.f32.mrf.mxu0
        %v1094 = vpop.f32.mrf.mxu0
        %1095 = vdwg.mxu0
        %v1096 = vpack.c.bf16 %v1091, %v1091
        %v1099 = vunpack.c.l.b16 %v875
        %v1100 = vunpack.c.l.b16 %v876
        %v1101 = vpack.c.b16 %v1100, %v1099
        %v1104 = vsel %vm380, %v1096, 0
        %1106 = vmatprep.subr.bf16.mxu0 0
        %1107 = vmatpush1.bf16.msra.mxu0 0
        %1108 = vmatprep.subr.bf16.mxu0 0
        %1109 = vmatpush1.bf16.msra.mxu0 0
        %1110 = vmatprep.subr.bf16.mxu0 0
        %1111 = vmatpush1.bf16.msra.mxu0 0
        %1112 = vmatprep.subr.bf16.mxu0 0
        %1113 = vmatpush1.bf16.msra.mxu0 0
        %1114 = vmatprep.subr.bf16.mxu0 0
        %1115 = vmatpush1.bf16.msra.mxu0 0
        %1116 = vmatprep.subr.bf16.mxu0 0
        %1117 = vmatpush1.bf16.msra.mxu0 0
        %1118 = vmatprep.subr.bf16.mxu0 0
        %1119 = vmatpush1.bf16.msra.mxu0 0
        %1120 = vmatprep.subr.bf16.mxu0 0
        %1121 = vmatpush1.bf16.msra.mxu0 %v1101
        %1122 = vmatprep.subr.bf16.mxu0 0
        %1123 = vmatpush2.bf16.msra.mxu0 0
        %1124 = vmatprep.subr.bf16.mxu0 0
        %1125 = vmatpush2.bf16.msra.mxu0 0
        %1126 = vmatprep.subr.bf16.mxu0 0
        %1127 = vmatpush2.bf16.msra.mxu0 0
        %1128 = vmatprep.subr.bf16.mxu0 0
        %1129 = vmatpush2.bf16.msra.mxu0 0
        %1130 = vmatprep.subr.bf16.mxu0 0
        %1131 = vmatpush2.bf16.msra.mxu0 0
        %1132 = vmatprep.subr.bf16.mxu0 0
        %1133 = vmatpush2.bf16.msra.mxu0 0
        %1134 = vmatprep.subr.bf16.mxu0 0
        %1135 = vmatpush2.bf16.msra.mxu0 0
        %1136 = vmatprep.subr.bf16.mxu0 0
        %1137 = vmatpush2.bf16.msra.mxu0 0
        %1138 = vmatprep.mubr.bf16.mxu0 0
        %1139 = vmatmul.mubr.bf16.gmra.mxu0 %v1104
        %v1140 = vpop.f32.mrf.mxu0
        %v1141 = vadd.f32 0.0, %v1140
        %v1142 = vpop.f32.mrf.mxu0
        %v1143 = vpop.f32.mrf.mxu0
        %v1144 = vpop.f32.mrf.mxu0
        %1145 = vdwg.mxu0
        %v1148 = vunpack.c.l.b16 %v873
        %v1149 = vunpack.c.l.b16 %v874
        %v1150 = vpack.c.b16 %v1149, %v1148
        %v1153 = vsel %vm380, %v984, 0
        %1155 = vmatprep.subr.bf16.mxu0 0
        %1156 = vmatpush1.bf16.msra.mxu0 0
        %1157 = vmatprep.subr.bf16.mxu0 0
        %1158 = vmatpush1.bf16.msra.mxu0 0
        %1159 = vmatprep.subr.bf16.mxu0 0
        %1160 = vmatpush1.bf16.msra.mxu0 0
        %1161 = vmatprep.subr.bf16.mxu0 0
        %1162 = vmatpush1.bf16.msra.mxu0 0
        %1163 = vmatprep.subr.bf16.mxu0 0
        %1164 = vmatpush1.bf16.msra.mxu0 0
        %1165 = vmatprep.subr.bf16.mxu0 0
        %1166 = vmatpush1.bf16.msra.mxu0 0
        %1167 = vmatprep.subr.bf16.mxu0 0
        %1168 = vmatpush1.bf16.msra.mxu0 0
        %1169 = vmatprep.subr.bf16.mxu0 0
        %1170 = vmatpush1.bf16.msra.mxu0 %v1150
        %1171 = vmatprep.subr.bf16.mxu0 0
        %1172 = vmatpush2.bf16.msra.mxu0 0
        %1173 = vmatprep.subr.bf16.mxu0 0
        %1174 = vmatpush2.bf16.msra.mxu0 0
        %1175 = vmatprep.subr.bf16.mxu0 0
        %1176 = vmatpush2.bf16.msra.mxu0 0
        %1177 = vmatprep.subr.bf16.mxu0 0
        %1178 = vmatpush2.bf16.msra.mxu0 0
        %1179 = vmatprep.subr.bf16.mxu0 0
        %1180 = vmatpush2.bf16.msra.mxu0 0
        %1181 = vmatprep.subr.bf16.mxu0 0
        %1182 = vmatpush2.bf16.msra.mxu0 0
        %1183 = vmatprep.subr.bf16.mxu0 0
        %1184 = vmatpush2.bf16.msra.mxu0 0
        %1185 = vmatprep.subr.bf16.mxu0 0
        %1186 = vmatpush2.bf16.msra.mxu0 0
        %1187 = vmatprep.mubr.bf16.mxu0 0
        %1188 = vmatmul.mubr.bf16.gmra.mxu0 %v1153
        %v1189 = vpop.f32.mrf.mxu0
        %v1190 = vadd.f32 %v1141, %v1189
        %v1191 = vpop.f32.mrf.mxu0
        %v1192 = vpop.f32.mrf.mxu0
        %v1193 = vpop.f32.mrf.mxu0
        %1194 = vdwg.mxu0
        %v1195 = vadd.f32 %v1190, %v723
        %v1196 = vsel %vm310, %v1195, 0.0
        %1197 = vadd.xlane.f32.xlu0 %v1196
        %v1198 = vpop.xlane.xlu0 %1197
        %v1199 = vmul.f32 %v1198, %v703
        %v1200 = vsub.f32 %v1195, %v1199
        %v1201 = vmul.f32 %v1200, %v1200
        %v1202 = vsel %vm310, %v1201, 0.0
        %1203 = vadd.xlane.f32.xlu0 %v1202
        %v1204 = vpop.xlane.xlu0 %1203
        %v1205 = vmul.f32 %v1204, %v703
        %v1206 = vadd.f32 %v1205, 1e-05
        %v1207 = vrsqrt.pop %v1206
        %v1208 = vmul.f32 %v1200, %v1207
        %v1209 = vlaneseq
        %v1210 = vshrl.u32 %v1209, 7
        %v1211 = vsub.s32 2, %v1210
        %v1212 = vrot.slane %v266, %v1211
        %v1213 = vmul.f32 %v1208, %v1212
        %v1214 = vlaneseq
        %v1215 = vshrl.u32 %v1214, 7
        %v1216 = vsub.s32 3, %v1215
        %v1217 = vrot.slane %v266, %v1216
        %v1218 = vadd.f32 %v1213, %v1217
        %v1219 = vld [vmem:[%s250 + $0x80] sm:$0xf]
        %v1220 = vld [vmem:[%s250 + $0x84] sm:$0xf]
        %v1221 = vld [vmem:[%s250 + $0x88] sm:$0xf]
        %v1222 = vld [vmem:[%s250 + $0x8c] sm:$0xf]
        %v1223 = vpack.c.bf16 %v1218, %v1218
        %v1224 = vlaneseq
        %v1225 = vshrl.u32 %v1224, 7
        %v1226 = vsub.s32 6, %v1225
        %v1227 = vrot.slane %v266, %v1226
        %v1232 = vunpack.c.l.b16 %v1219
        %v1233 = vunpack.c.l.b16 %v1220
        %v1234 = vunpack.c.l.b16 %v1221
        %v1235 = vunpack.c.l.b16 %v1222
        %v1236 = vpack.c.b16 %v1233, %v1232
        %v1237 = vpack.c.b16 %v1235, %v1234
        %v1239 = vsel %vm310, %v1223, 0
        %v1242 = vsel %vm310, %v1236, 0
        %v1245 = vsel %vm310, %v1237, 0
        %1247 = vmatprep.subr.bf16.mxu0 0
        %1248 = vmatpush1.bf16.xpose.msra.mxu0 0
        %1249 = vmatprep.subr.bf16.mxu0 0
        %1250 = vmatpush1.bf16.xpose.msra.mxu0 0
        %1251 = vmatprep.subr.bf16.mxu0 0
        %1252 = vmatpush1.bf16.xpose.msra.mxu0 0
        %1253 = vmatprep.subr.bf16.mxu0 0
        %1254 = vmatpush1.bf16.xpose.msra.mxu0 0
        %1255 = vmatprep.subr.bf16.mxu0 0
        %1256 = vmatpush1.bf16.xpose.msra.mxu0 0
        %1257 = vmatprep.subr.bf16.mxu0 0
        %1258 = vmatpush1.bf16.xpose.msra.mxu0 0
        %1259 = vmatprep.subr.bf16.mxu0 0
        %1260 = vmatpush1.bf16.xpose.msra.mxu0 %v1245
        %1261 = vmatprep.subr.bf16.mxu0 0
        %1262 = vmatpush1.bf16.xpose.msra.mxu0 %v1242
        %1263 = vmatprep.subr.bf16.mxu0 0
        %1264 = vmatpush2.bf16.xpose.msra.mxu0 0
        %1265 = vmatprep.subr.bf16.mxu0 0
        %1266 = vmatpush2.bf16.xpose.msra.mxu0 0
        %1267 = vmatprep.subr.bf16.mxu0 0
        %1268 = vmatpush2.bf16.xpose.msra.mxu0 0
        %1269 = vmatprep.subr.bf16.mxu0 0
        %1270 = vmatpush2.bf16.xpose.msra.mxu0 0
        %1271 = vmatprep.subr.bf16.mxu0 0
        %1272 = vmatpush2.bf16.xpose.msra.mxu0 0
        %1273 = vmatprep.subr.bf16.mxu0 0
        %1274 = vmatpush2.bf16.xpose.msra.mxu0 0
        %1275 = vmatprep.subr.bf16.mxu0 0
        %1276 = vmatpush2.bf16.xpose.msra.mxu0 0
        %1277 = vmatprep.subr.bf16.mxu0 0
        %1278 = vmatpush2.bf16.xpose.msra.mxu0 0
        %1279 = vmatprep.mubr.bf16.mxu0 0
        %1280 = vmatmul.mubr.bf16.gmra.mxu0 %v1239
        %v1281 = vpop.f32.mrf.mxu0
        %v1282 = vadd.f32 %v1227, %v1281
        %v1283 = vpop.f32.mrf.mxu0
        %v1284 = vpop.f32.mrf.mxu0
        %v1285 = vpop.f32.mrf.mxu0
        %1286 = vdwg.mxu0
        %v1287 = vmax.f32 %v1282, 0.0
        %v1288 = vld [vmem:[%s250 + $0x90] sm:$0xf]
        %v1289 = vld [vmem:[%s250 + $0x94] sm:$0xf]
        %v1290 = vld [vmem:[%s250 + $0x98] sm:$0xf]
        %v1291 = vld [vmem:[%s250 + $0x9c] sm:$0xf]
        %v1292 = vpack.c.bf16 %v1287, %v1287
        %v1293 = vlaneseq
        %v1294 = vshrl.u32 %v1293, 7
        %v1295 = vsub.s32 7, %v1294
        %v1296 = vrot.slane %v266, %v1295
        %v1301 = vunpack.c.l.b16 %v1288
        %v1302 = vunpack.c.l.b16 %v1289
        %v1303 = vunpack.c.l.b16 %v1290
        %v1304 = vunpack.c.l.b16 %v1291
        %v1305 = vpack.c.b16 %v1302, %v1301
        %v1306 = vpack.c.b16 %v1304, %v1303
        %v1308 = vsel %vm310, %v1292, 0
        %v1311 = vsel %vm310, %v1305, 0
        %v1314 = vsel %vm310, %v1306, 0
        %1316 = vmatprep.subr.bf16.mxu0 0
        %1317 = vmatpush1.bf16.xpose.msra.mxu0 0
        %1318 = vmatprep.subr.bf16.mxu0 0
        %1319 = vmatpush1.bf16.xpose.msra.mxu0 0
        %1320 = vmatprep.subr.bf16.mxu0 0
        %1321 = vmatpush1.bf16.xpose.msra.mxu0 0
        %1322 = vmatprep.subr.bf16.mxu0 0
        %1323 = vmatpush1.bf16.xpose.msra.mxu0 0
        %1324 = vmatprep.subr.bf16.mxu0 0
        %1325 = vmatpush1.bf16.xpose.msra.mxu0 0
        %1326 = vmatprep.subr.bf16.mxu0 0
        %1327 = vmatpush1.bf16.xpose.msra.mxu0 0
        %1328 = vmatprep.subr.bf16.mxu0 0
        %1329 = vmatpush1.bf16.xpose.msra.mxu0 %v1314
        %1330 = vmatprep.subr.bf16.mxu0 0
        %1331 = vmatpush1.bf16.xpose.msra.mxu0 %v1311
        %1332 = vmatprep.subr.bf16.mxu0 0
        %1333 = vmatpush2.bf16.xpose.msra.mxu0 0
        %1334 = vmatprep.subr.bf16.mxu0 0
        %1335 = vmatpush2.bf16.xpose.msra.mxu0 0
        %1336 = vmatprep.subr.bf16.mxu0 0
        %1337 = vmatpush2.bf16.xpose.msra.mxu0 0
        %1338 = vmatprep.subr.bf16.mxu0 0
        %1339 = vmatpush2.bf16.xpose.msra.mxu0 0
        %1340 = vmatprep.subr.bf16.mxu0 0
        %1341 = vmatpush2.bf16.xpose.msra.mxu0 0
        %1342 = vmatprep.subr.bf16.mxu0 0
        %1343 = vmatpush2.bf16.xpose.msra.mxu0 0
        %1344 = vmatprep.subr.bf16.mxu0 0
        %1345 = vmatpush2.bf16.xpose.msra.mxu0 0
        %1346 = vmatprep.subr.bf16.mxu0 0
        %1347 = vmatpush2.bf16.xpose.msra.mxu0 0
        %1348 = vmatprep.mubr.bf16.mxu0 0
        %1349 = vmatmul.mubr.bf16.gmra.mxu0 %v1308
        %v1350 = vpop.f32.mrf.mxu0
        %v1351 = vadd.f32 %v1296, %v1350
        %v1352 = vpop.f32.mrf.mxu0
        %v1353 = vpop.f32.mrf.mxu0
        %v1354 = vpop.f32.mrf.mxu0
        %1355 = vdwg.mxu0
        %v1356 = vadd.f32 %v1351, %v1218
        %v1357 = vsel %vm310, %v1356, 0.0
        %1358 = vadd.xlane.f32.xlu0 %v1357
        %v1359 = vpop.xlane.xlu0 %1358
        %v1360 = vmul.f32 %v1359, %v703
        %v1361 = vsub.f32 %v1356, %v1360
        %v1362 = vmul.f32 %v1361, %v1361
        %v1363 = vsel %vm310, %v1362, 0.0
        %1364 = vadd.xlane.f32.xlu0 %v1363
        %v1365 = vpop.xlane.xlu0 %1364
        %v1366 = vmul.f32 %v1365, %v703
        %v1367 = vadd.f32 %v1366, 1e-05
        %v1368 = vrsqrt.pop %v1367
        %v1369 = vmul.f32 %v1361, %v1368
        %v1370 = vlaneseq
        %v1371 = vshrl.u32 %v1370, 7
        %v1372 = vsub.s32 4, %v1371
        %v1373 = vrot.slane %v266, %v1372
        %v1374 = vmul.f32 %v1369, %v1373
        %v1375 = vlaneseq
        %v1376 = vshrl.u32 %v1375, 7
        %v1377 = vsub.s32 5, %v1376
        %v1378 = vrot.slane %v266, %v1377
        %v1379 = vadd.f32 %v1374, %v1378
        %p1380 = scmp.lt.s32.totalorder %s18, 1
        // Predicated region
        $region49: #{tpu_custom_call.1} parent=43 // pred_check
          %p1381 = pneg %p1380
        $region50: #{tpu_custom_call.1} parent=43 // pred_check_branch
          %1383 = sbr.rel (%p1381) target = $region52
        $region51: #{tpu_custom_call.1} parent=43 // pred_region
          %1384 = vst.msk [vmem:[#allocation2] sm:$0xff] %vm310, %v1379
        $region52: #{tpu_custom_call.1} parent=43 // pred_fallthru
          _
        %p1385 = scmp.eq.s32.totalorder %s18, 1
        // Predicated region
        $region53: #{tpu_custom_call.1} parent=43 // pred_check
          %p1386 = pneg %p1385
        $region54: #{tpu_custom_call.1} parent=43 // pred_check_branch
          %1388 = sbr.rel (%p1386) target = $region56
        $region55: #{tpu_custom_call.1} parent=43 // pred_region
          %v1389 = vld [vmem:[%s5] sm:$0x3]
          %v1390 = vsel %vm310, %v1379, 0.0
          %1391 = vadd.xlane.f32.xlu0 %v1390
          %v1392 = vpop.xlane.xlu0 %1391
          %v1393 = vmul.f32 %v1392, %v703
          %v1394 = vsub.f32 %v1379, %v1393
          %v1395 = vmul.f32 %v1394, %v1394
          %v1396 = vsel %vm310, %v1395, 0.0
          %1397 = vadd.xlane.f32.xlu0 %v1396
          %v1398 = vpop.xlane.xlu0 %1397
          %v1399 = vmul.f32 %v1398, %v703
          %v1400 = vadd.f32 %v1399, 1e-05
          %v1401 = vrsqrt.pop %v1400
          %v1402 = vmul.f32 %v1394, %v1401
          %v1403 = vlaneseq
          %v1404 = vshrl.u32 %v1403, 7
          %v1405 = vsub.s32 0, %v1404
          %v1406 = vrot.slane %v1389, %v1405
          %v1407 = vmul.f32 %v1402, %v1406
          %v1408 = vlaneseq
          %v1409 = vshrl.u32 %v1408, 7
          %v1410 = vsub.s32 1, %v1409
          %v1411 = vrot.slane %v1389, %v1410
          %v1412 = vadd.f32 %v1407, %v1411
          %1413 = vst.msk [vmem:[#allocation2] sm:$0xff] %vm310, %v1412
        $region56: #{tpu_custom_call.1} parent=43 // pred_fallthru
          _
        // Predicated region
        $region57: #{tpu_custom_call.1} parent=43 // pred_check
          %p1414 = pneg %p167
        $region58: #{tpu_custom_call.1} parent=43 // pred_check_branch
          %1416 = sbr.rel (%p1414) target = $region60
        $region59: #{tpu_custom_call.1} parent=43 // pred_region
          %s1418 = ssub.s32 128, 128
          %1419 = vsyncadd [#allocation3], %s1418
          %s1421 = sshll.u32 [#allocation2], 4
          %s1422 = int_to_ptr.vmem [resolvable:$true] %s1421
          %1424 = dma.vmem_to_hbm [thread:$0]  %s1422, 128, %s6, [#allocation3]
        $region60: #{tpu_custom_call.1} parent=43 // pred_fallthru
          _
        // Predicated region
        $region61: #{tpu_custom_call.1} parent=43 // pred_check
          %p1425 = pneg %p167
        $region62: #{tpu_custom_call.1} parent=43 // pred_check_branch
          %1427 = sbr.rel (%p1425) target = $region64
        $region63: #{tpu_custom_call.1} parent=43 // pred_region
          %1428 = dma.done [#allocation3], 128
        $region64: #{tpu_custom_call.1} parent=43 // pred_fallthru
          _
      $region44: #{tpu_custom_call.1} parent=5 // pred_fallthru
        _
      %p1429 = scmp.le.s32.totalorder 2, %s13
      // Predicated region
      $region65: #{tpu_custom_call.1} parent=5 // pred_check
        %p1430 = pneg %p1429
      $region66: #{tpu_custom_call.1} parent=5 // pred_check_branch
        %1432 = sbr.rel (%p1430) target = $region68
      $region67: #{tpu_custom_call.1} parent=5 // pred_region
        %s1433 = ssub.s32 %s13, 2
      $region68: #{tpu_custom_call.1} parent=5 // pred_fallthru
        _
    $region6: #{tpu_custom_call.1} parent=1 // loop_footer
      %s17 = sadd.s32 1, %s13
    $region7: #{tpu_custom_call.1} parent=1 // loop_footer_branch
      %12 = sbr.rel target = $region3
    $region8: #{tpu_custom_call.1} parent=1 // loop_exit
      _
    %1434 = vsyncpa [#allocation3], 1
    %s1435 = scalar_lea.sflag [#allocation3], 1
    %1436 = vsyncpa %s1435, 1

</llo_original>
